<compile_context>
chip_gen: v5e
topology: v5e:2x2
jax: 0.10.0
libtpu: 0.0.40
codegen_flags: <defaults>
</compile_context>

<pallas_src>
import functools

import jax
import jax.numpy as jnp
from jax import lax
from jax.experimental import pallas as pl
from jax.experimental.pallas import tpu as pltpu


def _conv3x3_im2col_kernel(x_ref, w_ref, b_ref, o_ref, patches_ref):
    # x_ref:       (1, H, W, Cin)   un-padded NHWC input tile (one batch element)
    # w_ref:       (Cr2, 9*Cin)     weights, column index = (kh*3 + kw)*Cin + ci
    # b_ref:       (Cr2, 1)         bias column
    # o_ref:       (1, Cr2, H*W)    conv output: channels on sublanes, flattened
    #                               spatial on lanes (lane-dense, NCHW order)
    # patches_ref: (H, W, 9*Cin)    VMEM scratch holding the im2col matrix
    _, H, W, Cin = x_ref.shape
    K = 9 * Cin

    # Boundary taps only fill their valid interior below -> zero = implicit pad=1.
    patches_ref[...] = jnp.zeros_like(patches_ref)

    # im2col with the 3x3 halo handled in-kernel (no padded copy of x in HBM).
    # All slice bounds are static Python ints.
    for kh in range(3):
        dh = kh - 1
        h0, h1 = max(0, -dh), H - max(0, dh)
        for kw in range(3):
            dw = kw - 1
            w0, w1 = max(0, -dw), W - max(0, dw)
            t = kh * 3 + kw
            patches_ref[h0:h1, w0:w1, t * Cin:(t + 1) * Cin] = (
                x_ref[0, h0 + dh:h1 + dh, w0 + dw:w1 + dw, :]
            )

    # One MXU dot, "NT" contraction (contract the trailing K dim of both operands):
    #   (Cr2, K) x (H*W, K) -> (Cr2, H*W)
    # This keeps the big spatial dim on lanes -> wide, unmasked output stores.
    patches = patches_ref[...].reshape(H * W, K)          # leading-dim merge only
    acc = lax.dot_general(
        w_ref[...], patches,
        dimension_numbers=(((1,), (1,)), ((), ())),
        preferred_element_type=jnp.float32,
    )
    acc = acc + b_ref[...]                                 # (Cr2, 1) lane broadcast
    o_ref[...] = acc.reshape(o_ref.shape).astype(o_ref.dtype)


def conv3x3_pallas(x_nhwc, w_mat, b_col):
    """3x3 / stride 1 / pad 1 conv.

    x_nhwc: (N, H, W, Cin), w_mat: (Cr2, 9*Cin), b_col: (Cr2, 1)
    returns (N, Cr2, H*W)  -- i.e. the NCHW conv output with spatial flattened.
    """
    N, H, W, Cin = x_nhwc.shape
    Cr2 = w_mat.shape[0]

    grid_spec = pltpu.PrefetchScalarGridSpec(
        num_scalar_prefetch=0,
        grid=(N,),
        in_specs=[
            pl.BlockSpec((1, H, W, Cin), lambda n: (n, 0, 0, 0)),
            pl.BlockSpec((Cr2, 9 * Cin), lambda n: (0, 0)),
            pl.BlockSpec((Cr2, 1), lambda n: (0, 0)),
        ],
        out_specs=pl.BlockSpec((1, Cr2, H * W), lambda n: (n, 0, 0)),
        scratch_shapes=[pltpu.VMEM((H, W, 9 * Cin), jnp.float32)],
    )
    return pl.pallas_call(
        _conv3x3_im2col_kernel,
        out_shape=jax.ShapeDtypeStruct((N, Cr2, H * W), x_nhwc.dtype),
        grid_spec=grid_spec,
        compiler_params=pltpu.CompilerParams(
            dimension_semantics=("parallel",),
        ),
    )(x_nhwc, w_mat, b_col)


def pixel_shuffle_block(x_nchw, weight_oihw, bias, upscale_factor):
    """Forward pass of PixelShuffleBlock.

    x_nchw:      (N, Cin, H, W)
    weight_oihw: (Cout*r^2, Cin, 3, 3)   (PyTorch conv weight layout)
    bias:        (Cout*r^2,)
    returns:     (N, Cout, H*r, W*r)     (NCHW, same as torch)
    """
    r = upscale_factor
    N, Cin, H, W = x_nchw.shape
    Cr2 = weight_oihw.shape[0]
    Cout = Cr2 // (r * r)

    # Glue (plain JAX): input NCHW -> NHWC; weights OIHW -> (Cr2, 9*Cin) with the
    # contraction dim ordered (kh, kw, ci) to match the kernel's patch columns.
    x_nhwc = jnp.transpose(x_nchw, (0, 2, 3, 1))
    w_mat = jnp.transpose(weight_oihw, (0, 2, 3, 1)).reshape(Cr2, 9 * Cin)
    b_col = bias.reshape(Cr2, 1)

    conv_flat = conv3x3_pallas(x_nhwc, w_mat, b_col)       # (N, Cr2, H*W)

    # PixelShuffle on the NCHW conv output (channel o = c*r^2 + i*r + j).
    y = conv_flat.reshape(N, Cout, r, r, H, W)
    y = jnp.transpose(y, (0, 1, 4, 2, 5, 3))               # (N, Cout, H, r, W, r)
    return y.reshape(N, Cout, H * r, W * r)


def _reference(x_nchw, weight_oihw, bias, r):
    """Pure-JAX reference (lax conv + pixel shuffle) for verification."""
    conv = lax.conv_general_dilated(
        x_nchw, weight_oihw,
        window_strides=(1, 1), padding=((1, 1), (1, 1)),
        dimension_numbers=("NCHW", "OIHW", "NCHW"),
    ) + bias[None, :, None, None]
    N, Cr2, H, W = conv.shape
    Cout = Cr2 // (r * r)
    y = conv.reshape(N, Cout, r, r, H, W)
    y = jnp.transpose(y, (0, 1, 4, 2, 5, 3))
    return y.reshape(N, Cout, H * r, W * r)


if __name__ == "__main__":
    in_channel, out_channel, upscale = 4, 3, 2
    N, H, W = 2, 16, 16

    key = jax.random.PRNGKey(0)
    kx, kw, kb = jax.random.split(key, 3)

    x = jax.random.normal(kx, (N, in_channel, H, W), dtype=jnp.float32)
    # Deterministic synthetic params (shapes match nn.Conv2d in __init__).
    fan_in = in_channel * 3 * 3
    bound = 1.0 / (fan_in ** 0.5)
    weight = jax.random.uniform(
        kw, (out_channel * upscale ** 2, in_channel, 3, 3),
        minval=-bound, maxval=bound, dtype=jnp.float32)
    bias = jax.random.uniform(
        kb, (out_channel * upscale ** 2,),
        minval=-bound, maxval=bound, dtype=jnp.float32)

    fwd = jax.jit(functools.partial(pixel_shuffle_block, upscale_factor=upscale))
    out = fwd(x, weight, bias)
    jax.block_until_ready(out)

    ref = _reference(x, weight, bias, upscale)
    assert out.shape == (N, out_channel, H * upscale, W * upscale), out.shape
    assert jnp.allclose(out, ref, atol=1e-4, rtol=1e-4), "mismatch vs reference"

    print("KERNEL_OK")
</pallas_src>

<mosaic_0001>
module attributes {stable_mosaic.version = 11 : i64} {
  func.func @_conv3x3_im2col_kernel(%arg0: i32, %arg1: memref<1x16x16x4xf32, #tpu.memory_space<vmem>>, %arg2: memref<12x36xf32, #tpu.memory_space<vmem>>, %arg3: memref<12x1xf32, #tpu.memory_space<vmem>>, %arg4: memref<1x12x256xf32, #tpu.memory_space<vmem>>, %arg5: memref<16x16x36xf32, #tpu.memory_space<vmem>>) attributes {dimension_semantics = [#tpu.dimension_semantics<parallel>], iteration_bounds = array<i64: 2>, scalar_prefetch = 0 : i64, scratch_operands = 1 : i64, tpu.core_type = #tpu.core_type<tc>, window_params = [{transform_indices = @transform_0, window_bounds = array<i64: 1, 16, 16, 4>}, {pipeline_mode = #tpu.pipeline_mode<synchronous>, transform_indices = @transform_1, window_bounds = array<i64: 12, 36>}, {pipeline_mode = #tpu.pipeline_mode<synchronous>, transform_indices = @transform_2, window_bounds = array<i64: 12, 1>}, {transform_indices = @transform_3, window_bounds = array<i64: 1, 12, 256>}]} {
    %cst = arith.constant 0.000000e+00 : f32
    %0 = vector.broadcast %cst : f32 to vector<16x16x36xf32>
    %c0 = arith.constant 0 : index
    %c0_0 = arith.constant 0 : index
    %c0_1 = arith.constant 0 : index
    %1 = vector.load %arg5[%c0, %c0_0, %c0_1] : memref<16x16x36xf32, #tpu.memory_space<vmem>>, vector<16x16x36xf32>
    tpu.vector_store %arg5[%c0, %c0_0, %c0_1], %0 {strides = array<i32>} : memref<16x16x36xf32, #tpu.memory_space<vmem>>, vector<16x16x36xf32>,
    %c0_2 = arith.constant 0 : index
    %c0_3 = arith.constant 0 : index
    %c0_4 = arith.constant 0 : index
    %c0_5 = arith.constant 0 : index
    %2 = vector.load %arg1[%c0_2, %c0_3, %c0_4, %c0_5] : memref<1x16x16x4xf32, #tpu.memory_space<vmem>>, vector<1x15x15x4xf32>
    %3 = vector.shape_cast %2 : vector<1x15x15x4xf32> to vector<15x15x4xf32>
    %c1 = arith.constant 1 : index
    %c1_6 = arith.constant 1 : index
    %c0_7 = arith.constant 0 : index
    %4 = vector.load %arg5[%c1, %c1_6, %c0_7] : memref<16x16x36xf32, #tpu.memory_space<vmem>>, vector<15x15x4xf32>
    tpu.vector_store %arg5[%c1, %c1_6, %c0_7], %3 {strides = array<i32>} : memref<16x16x36xf32, #tpu.memory_space<vmem>>, vector<15x15x4xf32>,
    %c0_8 = arith.constant 0 : index
    %c0_9 = arith.constant 0 : index
    %c0_10 = arith.constant 0 : index
    %c0_11 = arith.constant 0 : index
    %5 = vector.load %arg1[%c0_8, %c0_9, %c0_10, %c0_11] : memref<1x16x16x4xf32, #tpu.memory_space<vmem>>, vector<1x15x16x4xf32>
    %6 = vector.shape_cast %5 : vector<1x15x16x4xf32> to vector<15x16x4xf32>
    %c1_12 = arith.constant 1 : index
    %c0_13 = arith.constant 0 : index
    %c4 = arith.constant 4 : index
    %7 = vector.load %arg5[%c1_12, %c0_13, %c4] : memref<16x16x36xf32, #tpu.memory_space<vmem>>, vector<15x16x4xf32>
    tpu.vector_store %arg5[%c1_12, %c0_13, %c4], %6 {strides = array<i32>} : memref<16x16x36xf32, #tpu.memory_space<vmem>>, vector<15x16x4xf32>,
    %c0_14 = arith.constant 0 : index
    %c0_15 = arith.constant 0 : index
    %c1_16 = arith.constant 1 : index
    %c0_17 = arith.constant 0 : index
    %8 = vector.load %arg1[%c0_14, %c0_15, %c1_16, %c0_17] : memref<1x16x16x4xf32, #tpu.memory_space<vmem>>, vector<1x15x15x4xf32>
    %9 = vector.shape_cast %8 : vector<1x15x15x4xf32> to vector<15x15x4xf32>
    %c1_18 = arith.constant 1 : index
    %c0_19 = arith.constant 0 : index
    %c8 = arith.constant 8 : index
    %10 = vector.load %arg5[%c1_18, %c0_19, %c8] : memref<16x16x36xf32, #tpu.memory_space<vmem>>, vector<15x15x4xf32>
    tpu.vector_store %arg5[%c1_18, %c0_19, %c8], %9 {strides = array<i32>} : memref<16x16x36xf32, #tpu.memory_space<vmem>>, vector<15x15x4xf32>,
    %c0_20 = arith.constant 0 : index
    %c0_21 = arith.constant 0 : index
    %c0_22 = arith.constant 0 : index
    %c0_23 = arith.constant 0 : index
    %11 = vector.load %arg1[%c0_20, %c0_21, %c0_22, %c0_23] : memref<1x16x16x4xf32, #tpu.memory_space<vmem>>, vector<1x16x15x4xf32>
    %12 = vector.shape_cast %11 : vector<1x16x15x4xf32> to vector<16x15x4xf32>
    %c0_24 = arith.constant 0 : index
    %c1_25 = arith.constant 1 : index
    %c12 = arith.constant 12 : index
    %13 = vector.load %arg5[%c0_24, %c1_25, %c12] : memref<16x16x36xf32, #tpu.memory_space<vmem>>, vector<16x15x4xf32>
    tpu.vector_store %arg5[%c0_24, %c1_25, %c12], %12 {strides = array<i32>} : memref<16x16x36xf32, #tpu.memory_space<vmem>>, vector<16x15x4xf32>,
    %c0_26 = arith.constant 0 : index
    %c0_27 = arith.constant 0 : index
    %c0_28 = arith.constant 0 : index
    %c0_29 = arith.constant 0 : index
    %14 = vector.load %arg1[%c0_26, %c0_27, %c0_28, %c0_29] : memref<1x16x16x4xf32, #tpu.memory_space<vmem>>, vector<1x16x16x4xf32>
    %15 = vector.shape_cast %14 : vector<1x16x16x4xf32> to vector<16x16x4xf32>
    %c0_30 = arith.constant 0 : index
    %c0_31 = arith.constant 0 : index
    %c16 = arith.constant 16 : index
    %16 = vector.load %arg5[%c0_30, %c0_31, %c16] : memref<16x16x36xf32, #tpu.memory_space<vmem>>, vector<16x16x4xf32>
    tpu.vector_store %arg5[%c0_30, %c0_31, %c16], %15 {strides = array<i32>} : memref<16x16x36xf32, #tpu.memory_space<vmem>>, vector<16x16x4xf32>,
    %c0_32 = arith.constant 0 : index
    %c0_33 = arith.constant 0 : index
    %c1_34 = arith.constant 1 : index
    %c0_35 = arith.constant 0 : index
    %17 = vector.load %arg1[%c0_32, %c0_33, %c1_34, %c0_35] : memref<1x16x16x4xf32, #tpu.memory_space<vmem>>, vector<1x16x15x4xf32>
    %18 = vector.shape_cast %17 : vector<1x16x15x4xf32> to vector<16x15x4xf32>
    %c0_36 = arith.constant 0 : index
    %c0_37 = arith.constant 0 : index
    %c20 = arith.constant 20 : index
    %19 = vector.load %arg5[%c0_36, %c0_37, %c20] : memref<16x16x36xf32, #tpu.memory_space<vmem>>, vector<16x15x4xf32>
    tpu.vector_store %arg5[%c0_36, %c0_37, %c20], %18 {strides = array<i32>} : memref<16x16x36xf32, #tpu.memory_space<vmem>>, vector<16x15x4xf32>,
    %c0_38 = arith.constant 0 : index
    %c1_39 = arith.constant 1 : index
    %c0_40 = arith.constant 0 : index
    %c0_41 = arith.constant 0 : index
    %20 = vector.load %arg1[%c0_38, %c1_39, %c0_40, %c0_41] : memref<1x16x16x4xf32, #tpu.memory_space<vmem>>, vector<1x15x15x4xf32>
    %21 = vector.shape_cast %20 : vector<1x15x15x4xf32> to vector<15x15x4xf32>
    %c0_42 = arith.constant 0 : index
    %c1_43 = arith.constant 1 : index
    %c24 = arith.constant 24 : index
    %22 = vector.load %arg5[%c0_42, %c1_43, %c24] : memref<16x16x36xf32, #tpu.memory_space<vmem>>, vector<15x15x4xf32>
    tpu.vector_store %arg5[%c0_42, %c1_43, %c24], %21 {strides = array<i32>} : memref<16x16x36xf32, #tpu.memory_space<vmem>>, vector<15x15x4xf32>,
    %c0_44 = arith.constant 0 : index
    %c1_45 = arith.constant 1 : index
    %c0_46 = arith.constant 0 : index
    %c0_47 = arith.constant 0 : index
    %23 = vector.load %arg1[%c0_44, %c1_45, %c0_46, %c0_47] : memref<1x16x16x4xf32, #tpu.memory_space<vmem>>, vector<1x15x16x4xf32>
    %24 = vector.shape_cast %23 : vector<1x15x16x4xf32> to vector<15x16x4xf32>
    %c0_48 = arith.constant 0 : index
    %c0_49 = arith.constant 0 : index
    %c28 = arith.constant 28 : index
    %25 = vector.load %arg5[%c0_48, %c0_49, %c28] : memref<16x16x36xf32, #tpu.memory_space<vmem>>, vector<15x16x4xf32>
    tpu.vector_store %arg5[%c0_48, %c0_49, %c28], %24 {strides = array<i32>} : memref<16x16x36xf32, #tpu.memory_space<vmem>>, vector<15x16x4xf32>,
    %c0_50 = arith.constant 0 : index
    %c1_51 = arith.constant 1 : index
    %c1_52 = arith.constant 1 : index
    %c0_53 = arith.constant 0 : index
    %26 = vector.load %arg1[%c0_50, %c1_51, %c1_52, %c0_53] : memref<1x16x16x4xf32, #tpu.memory_space<vmem>>, vector<1x15x15x4xf32>
    %27 = vector.shape_cast %26 : vector<1x15x15x4xf32> to vector<15x15x4xf32>
    %c0_54 = arith.constant 0 : index
    %c0_55 = arith.constant 0 : index
    %c32 = arith.constant 32 : index
    %28 = vector.load %arg5[%c0_54, %c0_55, %c32] : memref<16x16x36xf32, #tpu.memory_space<vmem>>, vector<15x15x4xf32>
    tpu.vector_store %arg5[%c0_54, %c0_55, %c32], %27 {strides = array<i32>} : memref<16x16x36xf32, #tpu.memory_space<vmem>>, vector<15x15x4xf32>,
    %c0_56 = arith.constant 0 : index
    %c0_57 = arith.constant 0 : index
    %c0_58 = arith.constant 0 : index
    %29 = vector.load %arg5[%c0_56, %c0_57, %c0_58] : memref<16x16x36xf32, #tpu.memory_space<vmem>>, vector<16x16x36xf32>
    %30 = vector.shape_cast %29 : vector<16x16x36xf32> to vector<256x36xf32>
    %c0_59 = arith.constant 0 : index
    %c0_60 = arith.constant 0 : index
    %31 = vector.load %arg2[%c0_59, %c0_60] : memref<12x36xf32, #tpu.memory_space<vmem>>, vector<12x36xf32>
    %cst_61 = arith.constant dense<0.000000e+00> : vector<12x256xf32>
    %32 = tpu.matmul %31, %30, %cst_61 {dimension_numbers = #tpu.dot_dimension_numbers<[1], [1], [0], [0], [0, 0, 1, 0], [], []>} : vector<12x36xf32>, vector<256x36xf32>, vector<12x256xf32> -> vector<12x256xf32>
    %c0_62 = arith.constant 0 : index
    %c0_63 = arith.constant 0 : index
    %33 = vector.load %arg3[%c0_62, %c0_63] : memref<12x1xf32, #tpu.memory_space<vmem>>, vector<12x1xf32>
    %34 = vector.broadcast %33 : vector<12x1xf32> to vector<12x256xf32>
    %35 = arith.addf %32, %34 : vector<12x256xf32>
    %36 = vector.shape_cast %35 : vector<12x256xf32> to vector<1x12x256xf32>
    %c0_64 = arith.constant 0 : index
    %c0_65 = arith.constant 0 : index
    %c0_66 = arith.constant 0 : index
    %37 = vector.load %arg4[%c0_64, %c0_65, %c0_66] : memref<1x12x256xf32, #tpu.memory_space<vmem>>, vector<1x12x256xf32>
    tpu.vector_store %arg4[%c0_64, %c0_65, %c0_66], %36 {strides = array<i32>} : memref<1x12x256xf32, #tpu.memory_space<vmem>>, vector<1x12x256xf32>,
    return
  }
  func.func @transform_0(%arg0: i32) -> (i32, i32, i32, i32) {
    %c0_i32 = arith.constant 0 : i32
    %c0_i32_0 = arith.constant 0 : i32
    %c0_i32_1 = arith.constant 0 : i32
    %c0_i32_2 = arith.constant 0 : i32
    return %arg0, %c0_i32, %c0_i32_0, %c0_i32_1 : i32, i32, i32, i32
  }
  func.func @transform_1(%arg0: i32) -> (i32, i32) {
    %c0_i32 = arith.constant 0 : i32
    %c0_i32_0 = arith.constant 0 : i32
    %c0_i32_1 = arith.constant 0 : i32
    return %c0_i32, %c0_i32_0 : i32, i32
  }
  func.func @transform_2(%arg0: i32) -> (i32, i32) {
    %c0_i32 = arith.constant 0 : i32
    %c0_i32_0 = arith.constant 0 : i32
    %c0_i32_1 = arith.constant 0 : i32
    return %c0_i32, %c0_i32_0 : i32, i32
  }
  func.func @transform_3(%arg0: i32) -> (i32, i32, i32) {
    %c0_i32 = arith.constant 0 : i32
    %c0_i32_0 = arith.constant 0 : i32
    %c0_i32_1 = arith.constant 0 : i32
    return %arg0, %c0_i32, %c0_i32_0 : i32, i32, i32
  }
}

</mosaic_0001>

<llo_original>
// kernel: pixel_shuffle_block.1
$region0: #{pixel_shuffle_block.1}
  #allocation0 [shape = 'u32[]', space=smem, size = 0x4, offset = 0x4, fixed_abs, tag = 'smem constant byte address 0x4 - core index']
  #allocation1 [shape = 'u32[72,128]{1,0:T(1,128)}', space=vmem, size = 0x9000, scoped, tag = 'internal scratch']
  #allocation2 [shape = 'f32[16,16,36]{2,1,0:T(8,128)}', space=vmem, size = 0x20000, scoped, tag = 'scratch operand']
  %s0 = inlined_call_operand.vmem [shape: f32[2,16,16,4], index: 0, kind: input, shape index: {}]
  %s1 = inlined_call_operand.vmem [shape: f32[12,36], index: 1, kind: input, shape index: {}]
  %s2 = inlined_call_operand.vmem [shape: f32[12,1], index: 2, kind: input, shape index: {}]
  %s3 = inlined_call_operand.vmem [shape: f32[2,12,256], index: 3, kind: output, shape index: {}]
  %s4 = sld [smem:[#allocation0]]
  $region45: #{pixel_shuffle_block.1} parent=0
    _
  %s6 = ssub.s32 1, %s4
  %s7 = scalar_select 0, %s6, %s4
  loop: start=0, step=1, limit=4
  $region2: #{pixel_shuffle_block.1} parent=0 // loop_pre_header
    _
  $region3: #{pixel_shuffle_block.1} parent=0 // loop_header
    %s9 = sphi 0, %s13
    %p10 = scmp.ge.s32.totalorder %s9, 4
    %s19 = sphi 0, %s21
    %s22 = sphi 0, %s19
    %s23 = sphi 0, %s22
    %s39 = sphi 0, %s23
    %s43 = sphi 0, %s43
    %s45 = sphi 0, %s43
    %s46 = sphi 0, %s45
    %s60 = sphi 0, %s46
    %s64 = sphi 0, %s64
    %s66 = sphi 0, %s64
    %s67 = sphi 0, %s66
    %s81 = sphi 0, %s67
    %s87 = sphi 0, %s89
    %s90 = sphi 0, %s87
    %s91 = sphi 0, %s90
    %s107 = sphi 0, %s91
  $region4: #{pixel_shuffle_block.1} parent=0 // loop_header_branch
    %12 = sbr.rel (%p10) target = $region8
  $region5: #{pixel_shuffle_block.1} parent=0 // loop_body
    %s14 = ssub.s32 %s9, 1
    %s15 = ssub.s32 %s9, 2
    %s16 = sadd.s32 %s9, 1
    %s17 = ssub.s32 %s9, %s16
    %p18 = scmp.eq.s32.totalorder %s17, 0
    %s20 = sadd.s32 %s19, 1
    %s21 = scalar_select %p18, %s19, %s20
    %p24 = pneg %p18
    %p25 = scmp.eq.s32.totalorder %s9, 1
    %p26 = por %p24, %p25
    %p27 = scmp.ne.s32.totalorder %s19, %s22
    %p28 = scmp.eq.s32.totalorder %s9, 0
    %p29 = por %p27, %p28
    %p30 = scmp.ne.s32.totalorder %s19, %s22
    %p31 = scmp.eq.s32.totalorder %s14, 1
    %p32 = por %p30, %p31
    %p33 = scmp.ne.s32.totalorder %s22, %s23
    %p34 = scmp.eq.s32.totalorder %s14, 0
    %p35 = por %p33, %p34
    %p36 = scmp.ne.s32.totalorder %s22, %s23
    %p37 = scmp.eq.s32.totalorder %s15, 1
    %p38 = por %p36, %p37
    %p40 = scmp.ne.s32.totalorder %s23, %s39
    %p41 = scmp.eq.s32.totalorder %s15, 0
    %p42 = por %p40, %p41
    %s44 = sadd.s32 %s43, 1
    %p47 = scmp.eq.s32.totalorder %s9, 1
    %p48 = scmp.ne.s32.totalorder %s43, %s45
    %p49 = scmp.eq.s32.totalorder %s9, 0
    %p50 = por %p48, %p49
    %p51 = scmp.ne.s32.totalorder %s43, %s45
    %p52 = scmp.eq.s32.totalorder %s14, 1
    %p53 = por %p51, %p52
    %p54 = scmp.ne.s32.totalorder %s45, %s46
    %p55 = scmp.eq.s32.totalorder %s14, 0
    %p56 = por %p54, %p55
    %p57 = scmp.ne.s32.totalorder %s45, %s46
    %p58 = scmp.eq.s32.totalorder %s15, 1
    %p59 = por %p57, %p58
    %p61 = scmp.ne.s32.totalorder %s46, %s60
    %p62 = scmp.eq.s32.totalorder %s15, 0
    %p63 = por %p61, %p62
    %s65 = sadd.s32 %s64, 1
    %p68 = scmp.eq.s32.totalorder %s9, 1
    %p69 = scmp.ne.s32.totalorder %s64, %s66
    %p70 = scmp.eq.s32.totalorder %s9, 0
    %p71 = por %p69, %p70
    %p72 = scmp.ne.s32.totalorder %s64, %s66
    %p73 = scmp.eq.s32.totalorder %s14, 1
    %p74 = por %p72, %p73
    %p75 = scmp.ne.s32.totalorder %s66, %s67
    %p76 = scmp.eq.s32.totalorder %s14, 0
    %p77 = por %p75, %p76
    %p78 = scmp.ne.s32.totalorder %s66, %s67
    %p79 = scmp.eq.s32.totalorder %s15, 1
    %p80 = por %p78, %p79
    %p82 = scmp.ne.s32.totalorder %s67, %s81
    %p83 = scmp.eq.s32.totalorder %s15, 0
    %p84 = por %p82, %p83
    %s85 = ssub.s32 %s9, %s16
    %p86 = scmp.eq.s32.totalorder %s85, 0
    %s88 = sadd.s32 %s87, 1
    %s89 = scalar_select %p86, %s87, %s88
    %p92 = pneg %p86
    %p93 = scmp.eq.s32.totalorder %s9, 1
    %p94 = por %p92, %p93
    %p95 = scmp.ne.s32.totalorder %s87, %s90
    %p96 = scmp.eq.s32.totalorder %s9, 0
    %p97 = por %p95, %p96
    %p98 = scmp.ne.s32.totalorder %s87, %s90
    %p99 = scmp.eq.s32.totalorder %s14, 1
    %p100 = por %p98, %p99
    %p101 = scmp.ne.s32.totalorder %s90, %s91
    %p102 = scmp.eq.s32.totalorder %s14, 0
    %p103 = por %p101, %p102
    %p104 = scmp.ne.s32.totalorder %s90, %s91
    %p105 = scmp.eq.s32.totalorder %s15, 1
    %p106 = por %p104, %p105
    %p108 = scmp.ne.s32.totalorder %s91, %s107
    %p109 = scmp.eq.s32.totalorder %s15, 0
    %p110 = por %p108, %p109
    %p111 = scmp.le.s32.totalorder 1, %s9
    %p112 = scmp.lt.s32.totalorder %s9, 3
    %p113 = pnand %p111, %p112
    %p114 = pneg %p113
    // Predicated region
    $region9: #{pixel_shuffle_block.1} parent=5 // pred_check
      _
    $region10: #{pixel_shuffle_block.1} parent=5 // pred_check_branch
      %116 = sbr.rel (%p113) target = $region12
    $region11: #{pixel_shuffle_block.1} parent=5 // pred_region
      %s117 = ssub.s32 %s9, 1
      // Predicated region
      $region13: #{pixel_shuffle_block.1} parent=11 // pred_check
        %p118 = pneg %p56
      $region14: #{pixel_shuffle_block.1} parent=11 // pred_check_branch
        %120 = sbr.rel (%p118) target = $region16
      $region15: #{pixel_shuffle_block.1} parent=11 // pred_region
        _
      $region16: #{pixel_shuffle_block.1} parent=11 // pred_fallthru
        _
      // Predicated region
      $region17: #{pixel_shuffle_block.1} parent=11 // pred_check
        %p121 = pneg %p77
      $region18: #{pixel_shuffle_block.1} parent=11 // pred_check_branch
        %123 = sbr.rel (%p121) target = $region20
      $region19: #{pixel_shuffle_block.1} parent=11 // pred_region
        _
      $region20: #{pixel_shuffle_block.1} parent=11 // pred_fallthru
        _
    $region12: #{pixel_shuffle_block.1} parent=5 // pred_fallthru
      _
    %p124 = scmp.lt.s32.totalorder %s9, 2
    // Predicated region
    $region21: #{pixel_shuffle_block.1} parent=5 // pred_check
      %p125 = pneg %p124
    $region22: #{pixel_shuffle_block.1} parent=5 // pred_check_branch
      %127 = sbr.rel (%p125) target = $region24
    $region23: #{pixel_shuffle_block.1} parent=5 // pred_region
      // Predicated region
      $region25: #{pixel_shuffle_block.1} parent=23 // pred_check
        %p128 = pneg %p29
      $region26: #{pixel_shuffle_block.1} parent=23 // pred_check_branch
        %130 = sbr.rel (%p128) target = $region28
      $region27: #{pixel_shuffle_block.1} parent=23 // pred_region
        %p131 = scmp.lt.s32.totalorder %s9, 1
        %s132 = scalar_select %p131, %s9, 1
        %s133 = smul.addr %s132, 32
        %s134 = smul.addr %s133, 8
        %s135 = scalar_lea.vmem %s0, %s134
      $region28: #{pixel_shuffle_block.1} parent=23 // pred_fallthru
        _
    $region24: #{pixel_shuffle_block.1} parent=5 // pred_fallthru
      _
    %p136 = scmp.le.s32.totalorder 1, %s9
    %p137 = scmp.lt.s32.totalorder %s9, 3
    %p138 = pnand %p136, %p137
    %p139 = pneg %p138
    // Predicated region
    $region29: #{pixel_shuffle_block.1} parent=5 // pred_check
      _
    $region30: #{pixel_shuffle_block.1} parent=5 // pred_check_branch
      %141 = sbr.rel (%p138) target = $region32
    $region31: #{pixel_shuffle_block.1} parent=5 // pred_region
      %s142 = ssub.s32 %s9, 1
      %p143 = scmp.lt.s32.totalorder %s14, 1
      %s144 = scalar_select %p143, %s14, 1
      %s145 = smul.addr %s144, 32
      %s146 = smul.addr %s145, 8
      %s147 = scalar_lea.vmem %s0, %s146
      %p148 = pneg %p35
      %p149 = pneg %p32
      %p150 = pneg %p56
      %p151 = pneg %p53
      %p152 = pneg %p77
      %p153 = pneg %p74
      %p154 = pneg %p103
      %p155 = pneg %p100
      %p156 = scmp.lt.s32.totalorder %s14, 1
      %s157 = scalar_select %p156, %s14, 1
      %s158 = smul.addr %s157, 4
      %s159 = smul.addr %s158, 8
      %s160 = scalar_lea.vmem %s3, %s159
      %p161 = scmp.lt.s32.totalorder %s14, 1
      %s162 = scalar_select %p161, %s14, 1
      %s163 = smul.addr %s162, 32
      %s164 = smul.addr %s163, 8
      %s165 = scalar_lea.vmem %s0, %s164
      %p166 = scmp.lt.s32.totalorder %s14, 1
      %s167 = scalar_select %p166, %s14, 1
      %s168 = smul.addr %s167, 4
      %s169 = smul.addr %s168, 8
      %s170 = scalar_lea.vmem %s3, %s169
      %vm171 = vcmask 293888
      %172 = vst.msk [vmem:[#allocation2] sm:$0xff] %vm171, 0.0
      %173 = vst.msk [vmem:[#allocation2 + $0x8] sm:$0xff] %vm171, 0.0
      %174 = vst.msk [vmem:[#allocation2 + $0x10] sm:$0xff] %vm171, 0.0
      %175 = vst.msk [vmem:[#allocation2 + $0x18] sm:$0xff] %vm171, 0.0
      %176 = vst.msk [vmem:[#allocation2 + $0x20] sm:$0xff] %vm171, 0.0
      %177 = vst.msk [vmem:[#allocation2 + $0x28] sm:$0xff] %vm171, 0.0
      %178 = vst.msk [vmem:[#allocation2 + $0x30] sm:$0xff] %vm171, 0.0
      %179 = vst.msk [vmem:[#allocation2 + $0x38] sm:$0xff] %vm171, 0.0
      %180 = vst.msk [vmem:[#allocation2 + $0x40] sm:$0xff] %vm171, 0.0
      %181 = vst.msk [vmem:[#allocation2 + $0x48] sm:$0xff] %vm171, 0.0
      %182 = vst.msk [vmem:[#allocation2 + $0x50] sm:$0xff] %vm171, 0.0
      %183 = vst.msk [vmem:[#allocation2 + $0x58] sm:$0xff] %vm171, 0.0
      %184 = vst.msk [vmem:[#allocation2 + $0x60] sm:$0xff] %vm171, 0.0
      %185 = vst.msk [vmem:[#allocation2 + $0x68] sm:$0xff] %vm171, 0.0
      %186 = vst.msk [vmem:[#allocation2 + $0x70] sm:$0xff] %vm171, 0.0
      %187 = vst.msk [vmem:[#allocation2 + $0x78] sm:$0xff] %vm171, 0.0
      %188 = vst.msk [vmem:[#allocation2 + $0x80] sm:$0xff] %vm171, 0.0
      %189 = vst.msk [vmem:[#allocation2 + $0x88] sm:$0xff] %vm171, 0.0
      %190 = vst.msk [vmem:[#allocation2 + $0x90] sm:$0xff] %vm171, 0.0
      %191 = vst.msk [vmem:[#allocation2 + $0x98] sm:$0xff] %vm171, 0.0
      %192 = vst.msk [vmem:[#allocation2 + $0xa0] sm:$0xff] %vm171, 0.0
      %193 = vst.msk [vmem:[#allocation2 + $0xa8] sm:$0xff] %vm171, 0.0
      %194 = vst.msk [vmem:[#allocation2 + $0xb0] sm:$0xff] %vm171, 0.0
      %195 = vst.msk [vmem:[#allocation2 + $0xb8] sm:$0xff] %vm171, 0.0
      %196 = vst.msk [vmem:[#allocation2 + $0xc0] sm:$0xff] %vm171, 0.0
      %197 = vst.msk [vmem:[#allocation2 + $0xc8] sm:$0xff] %vm171, 0.0
      %198 = vst.msk [vmem:[#allocation2 + $0xd0] sm:$0xff] %vm171, 0.0
      %199 = vst.msk [vmem:[#allocation2 + $0xd8] sm:$0xff] %vm171, 0.0
      %200 = vst.msk [vmem:[#allocation2 + $0xe0] sm:$0xff] %vm171, 0.0
      %201 = vst.msk [vmem:[#allocation2 + $0xe8] sm:$0xff] %vm171, 0.0
      %202 = vst.msk [vmem:[#allocation2 + $0xf0] sm:$0xff] %vm171, 0.0
      %203 = vst.msk [vmem:[#allocation2 + $0xf8] sm:$0xff] %vm171, 0.0
      %v204 = vld [vmem:[%s165] sm:$0xff]
      %v205 = vld [vmem:[%s165 + $0x8] sm:$0x7f]
      %v206 = vld [vmem:[%s165 + $0x10] sm:$0xff]
      %v207 = vld [vmem:[%s165 + $0x18] sm:$0x7f]
      %v208 = vld [vmem:[%s165 + $0x20] sm:$0xff]
      %v209 = vld [vmem:[%s165 + $0x28] sm:$0x7f]
      %v210 = vld [vmem:[%s165 + $0x30] sm:$0xff]
      %v211 = vld [vmem:[%s165 + $0x38] sm:$0x7f]
      %v212 = vld [vmem:[%s165 + $0x40] sm:$0xff]
      %v213 = vld [vmem:[%s165 + $0x48] sm:$0x7f]
      %v214 = vld [vmem:[%s165 + $0x50] sm:$0xff]
      %v215 = vld [vmem:[%s165 + $0x58] sm:$0x7f]
      %v216 = vld [vmem:[%s165 + $0x60] sm:$0xff]
      %v217 = vld [vmem:[%s165 + $0x68] sm:$0x7f]
      %v218 = vld [vmem:[%s165 + $0x70] sm:$0xff]
      %v219 = vld [vmem:[%s165 + $0x78] sm:$0x7f]
      %v220 = vld [vmem:[%s165 + $0x80] sm:$0xff]
      %v221 = vld [vmem:[%s165 + $0x88] sm:$0x7f]
      %v222 = vld [vmem:[%s165 + $0x90] sm:$0xff]
      %v223 = vld [vmem:[%s165 + $0x98] sm:$0x7f]
      %v224 = vld [vmem:[%s165 + $0xa0] sm:$0xff]
      %v225 = vld [vmem:[%s165 + $0xa8] sm:$0x7f]
      %v226 = vld [vmem:[%s165 + $0xb0] sm:$0xff]
      %v227 = vld [vmem:[%s165 + $0xb8] sm:$0x7f]
      %v228 = vld [vmem:[%s165 + $0xc0] sm:$0xff]
      %v229 = vld [vmem:[%s165 + $0xc8] sm:$0x7f]
      %v230 = vld [vmem:[%s165 + $0xd0] sm:$0xff]
      %v231 = vld [vmem:[%s165 + $0xd8] sm:$0x7f]
      %v232 = vld [vmem:[%s165 + $0xe0] sm:$0xff]
      %v233 = vld [vmem:[%s165 + $0xe8] sm:$0x7f]
      %s234 = scalar_lea.vmem [#allocation2], 16
      %vm235 = vcmask 31744
      %236 = vst.msk [vmem:[%s234 + $0x1] sm:$0xff] %vm235, %v204
      %vm237 = vcmask 30720
      %238 = vst.msk [vmem:[%s234 + $0x9] sm:$0x7f] %vm237, %v205
      %239 = vst.msk [vmem:[%s234 + $0x11] sm:$0xff] %vm235, %v206
      %240 = vst.msk [vmem:[%s234 + $0x19] sm:$0x7f] %vm237, %v207
      %241 = vst.msk [vmem:[%s234 + $0x21] sm:$0xff] %vm235, %v208
      %242 = vst.msk [vmem:[%s234 + $0x29] sm:$0x7f] %vm237, %v209
      %243 = vst.msk [vmem:[%s234 + $0x31] sm:$0xff] %vm235, %v210
      %244 = vst.msk [vmem:[%s234 + $0x39] sm:$0x7f] %vm237, %v211
      %245 = vst.msk [vmem:[%s234 + $0x41] sm:$0xff] %vm235, %v212
      %246 = vst.msk [vmem:[%s234 + $0x49] sm:$0x7f] %vm237, %v213
      %247 = vst.msk [vmem:[%s234 + $0x51] sm:$0xff] %vm235, %v214
      %248 = vst.msk [vmem:[%s234 + $0x59] sm:$0x7f] %vm237, %v215
      %249 = vst.msk [vmem:[%s234 + $0x61] sm:$0xff] %vm235, %v216
      %250 = vst.msk [vmem:[%s234 + $0x69] sm:$0x7f] %vm237, %v217
      %251 = vst.msk [vmem:[%s234 + $0x71] sm:$0xff] %vm235, %v218
      %252 = vst.msk [vmem:[%s234 + $0x79] sm:$0x7f] %vm237, %v219
      %253 = vst.msk [vmem:[%s234 + $0x81] sm:$0xff] %vm235, %v220
      %254 = vst.msk [vmem:[%s234 + $0x89] sm:$0x7f] %vm237, %v221
      %255 = vst.msk [vmem:[%s234 + $0x91] sm:$0xff] %vm235, %v222
      %256 = vst.msk [vmem:[%s234 + $0x99] sm:$0x7f] %vm237, %v223
      %257 = vst.msk [vmem:[%s234 + $0xa1] sm:$0xff] %vm235, %v224
      %258 = vst.msk [vmem:[%s234 + $0xa9] sm:$0x7f] %vm237, %v225
      %259 = vst.msk [vmem:[%s234 + $0xb1] sm:$0xff] %vm235, %v226
      %260 = vst.msk [vmem:[%s234 + $0xb9] sm:$0x7f] %vm237, %v227
      %261 = vst.msk [vmem:[%s234 + $0xc1] sm:$0xff] %vm235, %v228
      %262 = vst.msk [vmem:[%s234 + $0xc9] sm:$0x7f] %vm237, %v229
      %263 = vst.msk [vmem:[%s234 + $0xd1] sm:$0xff] %vm235, %v230
      %264 = vst.msk [vmem:[%s234 + $0xd9] sm:$0x7f] %vm237, %v231
      %265 = vst.msk [vmem:[%s234 + $0xe1] sm:$0xff] %vm235, %v232
      %266 = vst.msk [vmem:[%s234 + $0xe9] sm:$0x7f] %vm237, %v233
      %v267 = vld [vmem:[%s165] sm:$0xff]
      %v268 = vld [vmem:[%s165 + $0x8] sm:$0xff]
      %v269 = vld [vmem:[%s165 + $0x10] sm:$0xff]
      %v270 = vld [vmem:[%s165 + $0x18] sm:$0xff]
      %v271 = vld [vmem:[%s165 + $0x20] sm:$0xff]
      %v272 = vld [vmem:[%s165 + $0x28] sm:$0xff]
      %v273 = vld [vmem:[%s165 + $0x30] sm:$0xff]
      %v274 = vld [vmem:[%s165 + $0x38] sm:$0xff]
      %v275 = vld [vmem:[%s165 + $0x40] sm:$0xff]
      %v276 = vld [vmem:[%s165 + $0x48] sm:$0xff]
      %v277 = vld [vmem:[%s165 + $0x50] sm:$0xff]
      %v278 = vld [vmem:[%s165 + $0x58] sm:$0xff]
      %v279 = vld [vmem:[%s165 + $0x60] sm:$0xff]
      %v280 = vld [vmem:[%s165 + $0x68] sm:$0xff]
      %v281 = vld [vmem:[%s165 + $0x70] sm:$0xff]
      %v282 = vld [vmem:[%s165 + $0x78] sm:$0xff]
      %v283 = vld [vmem:[%s165 + $0x80] sm:$0xff]
      %v284 = vld [vmem:[%s165 + $0x88] sm:$0xff]
      %v285 = vld [vmem:[%s165 + $0x90] sm:$0xff]
      %v286 = vld [vmem:[%s165 + $0x98] sm:$0xff]
      %v287 = vld [vmem:[%s165 + $0xa0] sm:$0xff]
      %v288 = vld [vmem:[%s165 + $0xa8] sm:$0xff]
      %v289 = vld [vmem:[%s165 + $0xb0] sm:$0xff]
      %v290 = vld [vmem:[%s165 + $0xb8] sm:$0xff]
      %v291 = vld [vmem:[%s165 + $0xc0] sm:$0xff]
      %v292 = vld [vmem:[%s165 + $0xc8] sm:$0xff]
      %v293 = vld [vmem:[%s165 + $0xd0] sm:$0xff]
      %v294 = vld [vmem:[%s165 + $0xd8] sm:$0xff]
      %v295 = vld [vmem:[%s165 + $0xe0] sm:$0xff]
      %v296 = vld [vmem:[%s165 + $0xe8] sm:$0xff]
      %327 = vrot.lane.b32.xlu0 %v267, 4
      %v328 = vpop.permute.xlu0 %327
      %329 = vrot.lane.b32.xlu0 %v268, 4
      %v330 = vpop.permute.xlu0 %329
      %331 = vrot.lane.b32.xlu0 %v269, 4
      %v332 = vpop.permute.xlu0 %331
      %333 = vrot.lane.b32.xlu0 %v270, 4
      %v334 = vpop.permute.xlu0 %333
      %335 = vrot.lane.b32.xlu0 %v271, 4
      %v336 = vpop.permute.xlu0 %335
      %337 = vrot.lane.b32.xlu0 %v272, 4
      %v338 = vpop.permute.xlu0 %337
      %339 = vrot.lane.b32.xlu0 %v273, 4
      %v340 = vpop.permute.xlu0 %339
      %341 = vrot.lane.b32.xlu0 %v274, 4
      %v342 = vpop.permute.xlu0 %341
      %343 = vrot.lane.b32.xlu0 %v275, 4
      %v344 = vpop.permute.xlu0 %343
      %345 = vrot.lane.b32.xlu0 %v276, 4
      %v346 = vpop.permute.xlu0 %345
      %347 = vrot.lane.b32.xlu0 %v277, 4
      %v348 = vpop.permute.xlu0 %347
      %349 = vrot.lane.b32.xlu0 %v278, 4
      %v350 = vpop.permute.xlu0 %349
      %351 = vrot.lane.b32.xlu0 %v279, 4
      %v352 = vpop.permute.xlu0 %351
      %353 = vrot.lane.b32.xlu0 %v280, 4
      %v354 = vpop.permute.xlu0 %353
      %355 = vrot.lane.b32.xlu0 %v281, 4
      %v356 = vpop.permute.xlu0 %355
      %357 = vrot.lane.b32.xlu0 %v282, 4
      %v358 = vpop.permute.xlu0 %357
      %359 = vrot.lane.b32.xlu0 %v283, 4
      %v360 = vpop.permute.xlu0 %359
      %361 = vrot.lane.b32.xlu0 %v284, 4
      %v362 = vpop.permute.xlu0 %361
      %363 = vrot.lane.b32.xlu0 %v285, 4
      %v364 = vpop.permute.xlu0 %363
      %365 = vrot.lane.b32.xlu0 %v286, 4
      %v366 = vpop.permute.xlu0 %365
      %367 = vrot.lane.b32.xlu0 %v287, 4
      %v368 = vpop.permute.xlu0 %367
      %369 = vrot.lane.b32.xlu0 %v288, 4
      %v370 = vpop.permute.xlu0 %369
      %371 = vrot.lane.b32.xlu0 %v289, 4
      %v372 = vpop.permute.xlu0 %371
      %373 = vrot.lane.b32.xlu0 %v290, 4
      %v374 = vpop.permute.xlu0 %373
      %375 = vrot.lane.b32.xlu0 %v291, 4
      %v376 = vpop.permute.xlu0 %375
      %377 = vrot.lane.b32.xlu0 %v292, 4
      %v378 = vpop.permute.xlu0 %377
      %379 = vrot.lane.b32.xlu0 %v293, 4
      %v380 = vpop.permute.xlu0 %379
      %381 = vrot.lane.b32.xlu0 %v294, 4
      %v382 = vpop.permute.xlu0 %381
      %383 = vrot.lane.b32.xlu0 %v295, 4
      %v384 = vpop.permute.xlu0 %383
      %385 = vrot.lane.b32.xlu0 %v296, 4
      %v386 = vpop.permute.xlu0 %385
      %vm417 = vcmask 64544
      %418 = vst.msk [vmem:[%s234] sm:$0xff] %vm417, %v328
      %419 = vst.msk [vmem:[%s234 + $0x8] sm:$0xff] %vm417, %v330
      %420 = vst.msk [vmem:[%s234 + $0x10] sm:$0xff] %vm417, %v332
      %421 = vst.msk [vmem:[%s234 + $0x18] sm:$0xff] %vm417, %v334
      %422 = vst.msk [vmem:[%s234 + $0x20] sm:$0xff] %vm417, %v336
      %423 = vst.msk [vmem:[%s234 + $0x28] sm:$0xff] %vm417, %v338
      %424 = vst.msk [vmem:[%s234 + $0x30] sm:$0xff] %vm417, %v340
      %425 = vst.msk [vmem:[%s234 + $0x38] sm:$0xff] %vm417, %v342
      %426 = vst.msk [vmem:[%s234 + $0x40] sm:$0xff] %vm417, %v344
      %427 = vst.msk [vmem:[%s234 + $0x48] sm:$0xff] %vm417, %v346
      %428 = vst.msk [vmem:[%s234 + $0x50] sm:$0xff] %vm417, %v348
      %429 = vst.msk [vmem:[%s234 + $0x58] sm:$0xff] %vm417, %v350
      %430 = vst.msk [vmem:[%s234 + $0x60] sm:$0xff] %vm417, %v352
      %431 = vst.msk [vmem:[%s234 + $0x68] sm:$0xff] %vm417, %v354
      %432 = vst.msk [vmem:[%s234 + $0x70] sm:$0xff] %vm417, %v356
      %433 = vst.msk [vmem:[%s234 + $0x78] sm:$0xff] %vm417, %v358
      %434 = vst.msk [vmem:[%s234 + $0x80] sm:$0xff] %vm417, %v360
      %435 = vst.msk [vmem:[%s234 + $0x88] sm:$0xff] %vm417, %v362
      %436 = vst.msk [vmem:[%s234 + $0x90] sm:$0xff] %vm417, %v364
      %437 = vst.msk [vmem:[%s234 + $0x98] sm:$0xff] %vm417, %v366
      %438 = vst.msk [vmem:[%s234 + $0xa0] sm:$0xff] %vm417, %v368
      %439 = vst.msk [vmem:[%s234 + $0xa8] sm:$0xff] %vm417, %v370
      %440 = vst.msk [vmem:[%s234 + $0xb0] sm:$0xff] %vm417, %v372
      %441 = vst.msk [vmem:[%s234 + $0xb8] sm:$0xff] %vm417, %v374
      %442 = vst.msk [vmem:[%s234 + $0xc0] sm:$0xff] %vm417, %v376
      %443 = vst.msk [vmem:[%s234 + $0xc8] sm:$0xff] %vm417, %v378
      %444 = vst.msk [vmem:[%s234 + $0xd0] sm:$0xff] %vm417, %v380
      %445 = vst.msk [vmem:[%s234 + $0xd8] sm:$0xff] %vm417, %v382
      %446 = vst.msk [vmem:[%s234 + $0xe0] sm:$0xff] %vm417, %v384
      %447 = vst.msk [vmem:[%s234 + $0xe8] sm:$0xff] %vm417, %v386
      %v448 = vld [vmem:[%s165 + $0x1] sm:$0xff]
      %v449 = vld [vmem:[%s165 + $0x9] sm:$0x7f]
      %v450 = vld [vmem:[%s165 + $0x11] sm:$0xff]
      %v451 = vld [vmem:[%s165 + $0x19] sm:$0x7f]
      %v452 = vld [vmem:[%s165 + $0x21] sm:$0xff]
      %v453 = vld [vmem:[%s165 + $0x29] sm:$0x7f]
      %v454 = vld [vmem:[%s165 + $0x31] sm:$0xff]
      %v455 = vld [vmem:[%s165 + $0x39] sm:$0x7f]
      %v456 = vld [vmem:[%s165 + $0x41] sm:$0xff]
      %v457 = vld [vmem:[%s165 + $0x49] sm:$0x7f]
      %v458 = vld [vmem:[%s165 + $0x51] sm:$0xff]
      %v459 = vld [vmem:[%s165 + $0x59] sm:$0x7f]
      %v460 = vld [vmem:[%s165 + $0x61] sm:$0xff]
      %v461 = vld [vmem:[%s165 + $0x69] sm:$0x7f]
      %v462 = vld [vmem:[%s165 + $0x71] sm:$0xff]
      %v463 = vld [vmem:[%s165 + $0x79] sm:$0x7f]
      %v464 = vld [vmem:[%s165 + $0x81] sm:$0xff]
      %v465 = vld [vmem:[%s165 + $0x89] sm:$0x7f]
      %v466 = vld [vmem:[%s165 + $0x91] sm:$0xff]
      %v467 = vld [vmem:[%s165 + $0x99] sm:$0x7f]
      %v468 = vld [vmem:[%s165 + $0xa1] sm:$0xff]
      %v469 = vld [vmem:[%s165 + $0xa9] sm:$0x7f]
      %v470 = vld [vmem:[%s165 + $0xb1] sm:$0xff]
      %v471 = vld [vmem:[%s165 + $0xb9] sm:$0x7f]
      %v472 = vld [vmem:[%s165 + $0xc1] sm:$0xff]
      %v473 = vld [vmem:[%s165 + $0xc9] sm:$0x7f]
      %v474 = vld [vmem:[%s165 + $0xd1] sm:$0xff]
      %v475 = vld [vmem:[%s165 + $0xd9] sm:$0x7f]
      %v476 = vld [vmem:[%s165 + $0xe1] sm:$0xff]
      %v477 = vld [vmem:[%s165 + $0xe9] sm:$0x7f]
      %508 = vrot.lane.b32.xlu0 %v448, 8
      %v509 = vpop.permute.xlu0 %508
      %510 = vrot.lane.b32.xlu0 %v449, 8
      %v511 = vpop.permute.xlu0 %510
      %512 = vrot.lane.b32.xlu0 %v450, 8
      %v513 = vpop.permute.xlu0 %512
      %514 = vrot.lane.b32.xlu0 %v451, 8
      %v515 = vpop.permute.xlu0 %514
      %516 = vrot.lane.b32.xlu0 %v452, 8
      %v517 = vpop.permute.xlu0 %516
      %518 = vrot.lane.b32.xlu0 %v453, 8
      %v519 = vpop.permute.xlu0 %518
      %520 = vrot.lane.b32.xlu0 %v454, 8
      %v521 = vpop.permute.xlu0 %520
      %522 = vrot.lane.b32.xlu0 %v455, 8
      %v523 = vpop.permute.xlu0 %522
      %524 = vrot.lane.b32.xlu0 %v456, 8
      %v525 = vpop.permute.xlu0 %524
      %526 = vrot.lane.b32.xlu0 %v457, 8
      %v527 = vpop.permute.xlu0 %526
      %528 = vrot.lane.b32.xlu0 %v458, 8
      %v529 = vpop.permute.xlu0 %528
      %530 = vrot.lane.b32.xlu0 %v459, 8
      %v531 = vpop.permute.xlu0 %530
      %532 = vrot.lane.b32.xlu0 %v460, 8
      %v533 = vpop.permute.xlu0 %532
      %534 = vrot.lane.b32.xlu0 %v461, 8
      %v535 = vpop.permute.xlu0 %534
      %536 = vrot.lane.b32.xlu0 %v462, 8
      %v537 = vpop.permute.xlu0 %536
      %538 = vrot.lane.b32.xlu0 %v463, 8
      %v539 = vpop.permute.xlu0 %538
      %540 = vrot.lane.b32.xlu0 %v464, 8
      %v541 = vpop.permute.xlu0 %540
      %542 = vrot.lane.b32.xlu0 %v465, 8
      %v543 = vpop.permute.xlu0 %542
      %544 = vrot.lane.b32.xlu0 %v466, 8
      %v545 = vpop.permute.xlu0 %544
      %546 = vrot.lane.b32.xlu0 %v467, 8
      %v547 = vpop.permute.xlu0 %546
      %548 = vrot.lane.b32.xlu0 %v468, 8
      %v549 = vpop.permute.xlu0 %548
      %550 = vrot.lane.b32.xlu0 %v469, 8
      %v551 = vpop.permute.xlu0 %550
      %552 = vrot.lane.b32.xlu0 %v470, 8
      %v553 = vpop.permute.xlu0 %552
      %554 = vrot.lane.b32.xlu0 %v471, 8
      %v555 = vpop.permute.xlu0 %554
      %556 = vrot.lane.b32.xlu0 %v472, 8
      %v557 = vpop.permute.xlu0 %556
      %558 = vrot.lane.b32.xlu0 %v473, 8
      %v559 = vpop.permute.xlu0 %558
      %560 = vrot.lane.b32.xlu0 %v474, 8
      %v561 = vpop.permute.xlu0 %560
      %562 = vrot.lane.b32.xlu0 %v475, 8
      %v563 = vpop.permute.xlu0 %562
      %564 = vrot.lane.b32.xlu0 %v476, 8
      %v565 = vpop.permute.xlu0 %564
      %566 = vrot.lane.b32.xlu0 %v477, 8
      %v567 = vpop.permute.xlu0 %566
      %vm598 = vcmask 97344
      %599 = vst.msk [vmem:[%s234] sm:$0xff] %vm598, %v509
      %vm600 = vcmask 96320
      %601 = vst.msk [vmem:[%s234 + $0x8] sm:$0x7f] %vm600, %v511
      %602 = vst.msk [vmem:[%s234 + $0x10] sm:$0xff] %vm598, %v513
      %603 = vst.msk [vmem:[%s234 + $0x18] sm:$0x7f] %vm600, %v515
      %604 = vst.msk [vmem:[%s234 + $0x20] sm:$0xff] %vm598, %v517
      %605 = vst.msk [vmem:[%s234 + $0x28] sm:$0x7f] %vm600, %v519
      %606 = vst.msk [vmem:[%s234 + $0x30] sm:$0xff] %vm598, %v521
      %607 = vst.msk [vmem:[%s234 + $0x38] sm:$0x7f] %vm600, %v523
      %608 = vst.msk [vmem:[%s234 + $0x40] sm:$0xff] %vm598, %v525
      %609 = vst.msk [vmem:[%s234 + $0x48] sm:$0x7f] %vm600, %v527
      %610 = vst.msk [vmem:[%s234 + $0x50] sm:$0xff] %vm598, %v529
      %611 = vst.msk [vmem:[%s234 + $0x58] sm:$0x7f] %vm600, %v531
      %612 = vst.msk [vmem:[%s234 + $0x60] sm:$0xff] %vm598, %v533
      %613 = vst.msk [vmem:[%s234 + $0x68] sm:$0x7f] %vm600, %v535
      %614 = vst.msk [vmem:[%s234 + $0x70] sm:$0xff] %vm598, %v537
      %615 = vst.msk [vmem:[%s234 + $0x78] sm:$0x7f] %vm600, %v539
      %616 = vst.msk [vmem:[%s234 + $0x80] sm:$0xff] %vm598, %v541
      %617 = vst.msk [vmem:[%s234 + $0x88] sm:$0x7f] %vm600, %v543
      %618 = vst.msk [vmem:[%s234 + $0x90] sm:$0xff] %vm598, %v545
      %619 = vst.msk [vmem:[%s234 + $0x98] sm:$0x7f] %vm600, %v547
      %620 = vst.msk [vmem:[%s234 + $0xa0] sm:$0xff] %vm598, %v549
      %621 = vst.msk [vmem:[%s234 + $0xa8] sm:$0x7f] %vm600, %v551
      %622 = vst.msk [vmem:[%s234 + $0xb0] sm:$0xff] %vm598, %v553
      %623 = vst.msk [vmem:[%s234 + $0xb8] sm:$0x7f] %vm600, %v555
      %624 = vst.msk [vmem:[%s234 + $0xc0] sm:$0xff] %vm598, %v557
      %625 = vst.msk [vmem:[%s234 + $0xc8] sm:$0x7f] %vm600, %v559
      %626 = vst.msk [vmem:[%s234 + $0xd0] sm:$0xff] %vm598, %v561
      %627 = vst.msk [vmem:[%s234 + $0xd8] sm:$0x7f] %vm600, %v563
      %628 = vst.msk [vmem:[%s234 + $0xe0] sm:$0xff] %vm598, %v565
      %629 = vst.msk [vmem:[%s234 + $0xe8] sm:$0x7f] %vm600, %v567
      %v630 = vld [vmem:[%s165] sm:$0xff]
      %v631 = vld [vmem:[%s165 + $0x8] sm:$0x7f]
      %v632 = vld [vmem:[%s165 + $0x10] sm:$0xff]
      %v633 = vld [vmem:[%s165 + $0x18] sm:$0x7f]
      %v634 = vld [vmem:[%s165 + $0x20] sm:$0xff]
      %v635 = vld [vmem:[%s165 + $0x28] sm:$0x7f]
      %v636 = vld [vmem:[%s165 + $0x30] sm:$0xff]
      %v637 = vld [vmem:[%s165 + $0x38] sm:$0x7f]
      %v638 = vld [vmem:[%s165 + $0x40] sm:$0xff]
      %v639 = vld [vmem:[%s165 + $0x48] sm:$0x7f]
      %v640 = vld [vmem:[%s165 + $0x50] sm:$0xff]
      %v641 = vld [vmem:[%s165 + $0x58] sm:$0x7f]
      %v642 = vld [vmem:[%s165 + $0x60] sm:$0xff]
      %v643 = vld [vmem:[%s165 + $0x68] sm:$0x7f]
      %v644 = vld [vmem:[%s165 + $0x70] sm:$0xff]
      %v645 = vld [vmem:[%s165 + $0x78] sm:$0x7f]
      %v646 = vld [vmem:[%s165 + $0x80] sm:$0xff]
      %v647 = vld [vmem:[%s165 + $0x88] sm:$0x7f]
      %v648 = vld [vmem:[%s165 + $0x90] sm:$0xff]
      %v649 = vld [vmem:[%s165 + $0x98] sm:$0x7f]
      %v650 = vld [vmem:[%s165 + $0xa0] sm:$0xff]
      %v651 = vld [vmem:[%s165 + $0xa8] sm:$0x7f]
      %v652 = vld [vmem:[%s165 + $0xb0] sm:$0xff]
      %v653 = vld [vmem:[%s165 + $0xb8] sm:$0x7f]
      %v654 = vld [vmem:[%s165 + $0xc0] sm:$0xff]
      %v655 = vld [vmem:[%s165 + $0xc8] sm:$0x7f]
      %v656 = vld [vmem:[%s165 + $0xd0] sm:$0xff]
      %v657 = vld [vmem:[%s165 + $0xd8] sm:$0x7f]
      %v658 = vld [vmem:[%s165 + $0xe0] sm:$0xff]
      %v659 = vld [vmem:[%s165 + $0xe8] sm:$0x7f]
      %v660 = vld [vmem:[%s165 + $0xf0] sm:$0xff]
      %v661 = vld [vmem:[%s165 + $0xf8] sm:$0x7f]
      %694 = vrot.lane.b32.xlu0 %v630, 12
      %v695 = vpop.permute.xlu0 %694
      %696 = vrot.lane.b32.xlu0 %v631, 12
      %v697 = vpop.permute.xlu0 %696
      %698 = vrot.lane.b32.xlu0 %v632, 12
      %v699 = vpop.permute.xlu0 %698
      %700 = vrot.lane.b32.xlu0 %v633, 12
      %v701 = vpop.permute.xlu0 %700
      %702 = vrot.lane.b32.xlu0 %v634, 12
      %v703 = vpop.permute.xlu0 %702
      %704 = vrot.lane.b32.xlu0 %v635, 12
      %v705 = vpop.permute.xlu0 %704
      %706 = vrot.lane.b32.xlu0 %v636, 12
      %v707 = vpop.permute.xlu0 %706
      %708 = vrot.lane.b32.xlu0 %v637, 12
      %v709 = vpop.permute.xlu0 %708
      %710 = vrot.lane.b32.xlu0 %v638, 12
      %v711 = vpop.permute.xlu0 %710
      %712 = vrot.lane.b32.xlu0 %v639, 12
      %v713 = vpop.permute.xlu0 %712
      %714 = vrot.lane.b32.xlu0 %v640, 12
      %v715 = vpop.permute.xlu0 %714
      %716 = vrot.lane.b32.xlu0 %v641, 12
      %v717 = vpop.permute.xlu0 %716
      %718 = vrot.lane.b32.xlu0 %v642, 12
      %v719 = vpop.permute.xlu0 %718
      %720 = vrot.lane.b32.xlu0 %v643, 12
      %v721 = vpop.permute.xlu0 %720
      %722 = vrot.lane.b32.xlu0 %v644, 12
      %v723 = vpop.permute.xlu0 %722
      %724 = vrot.lane.b32.xlu0 %v645, 12
      %v725 = vpop.permute.xlu0 %724
      %726 = vrot.lane.b32.xlu0 %v646, 12
      %v727 = vpop.permute.xlu0 %726
      %728 = vrot.lane.b32.xlu0 %v647, 12
      %v729 = vpop.permute.xlu0 %728
      %730 = vrot.lane.b32.xlu0 %v648, 12
      %v731 = vpop.permute.xlu0 %730
      %732 = vrot.lane.b32.xlu0 %v649, 12
      %v733 = vpop.permute.xlu0 %732
      %734 = vrot.lane.b32.xlu0 %v650, 12
      %v735 = vpop.permute.xlu0 %734
      %736 = vrot.lane.b32.xlu0 %v651, 12
      %v737 = vpop.permute.xlu0 %736
      %738 = vrot.lane.b32.xlu0 %v652, 12
      %v739 = vpop.permute.xlu0 %738
      %740 = vrot.lane.b32.xlu0 %v653, 12
      %v741 = vpop.permute.xlu0 %740
      %742 = vrot.lane.b32.xlu0 %v654, 12
      %v743 = vpop.permute.xlu0 %742
      %744 = vrot.lane.b32.xlu0 %v655, 12
      %v745 = vpop.permute.xlu0 %744
      %746 = vrot.lane.b32.xlu0 %v656, 12
      %v747 = vpop.permute.xlu0 %746
      %748 = vrot.lane.b32.xlu0 %v657, 12
      %v749 = vpop.permute.xlu0 %748
      %750 = vrot.lane.b32.xlu0 %v658, 12
      %v751 = vpop.permute.xlu0 %750
      %752 = vrot.lane.b32.xlu0 %v659, 12
      %v753 = vpop.permute.xlu0 %752
      %754 = vrot.lane.b32.xlu0 %v660, 12
      %v755 = vpop.permute.xlu0 %754
      %756 = vrot.lane.b32.xlu0 %v661, 12
      %v757 = vpop.permute.xlu0 %756
      %vm790 = vcmask 130144
      %791 = vst.msk [vmem:[#allocation2 + $0x1] sm:$0xff] %vm790, %v695
      %vm792 = vcmask 129120
      %793 = vst.msk [vmem:[#allocation2 + $0x9] sm:$0x7f] %vm792, %v697
      %794 = vst.msk [vmem:[#allocation2 + $0x11] sm:$0xff] %vm790, %v699
      %795 = vst.msk [vmem:[#allocation2 + $0x19] sm:$0x7f] %vm792, %v701
      %796 = vst.msk [vmem:[#allocation2 + $0x21] sm:$0xff] %vm790, %v703
      %797 = vst.msk [vmem:[#allocation2 + $0x29] sm:$0x7f] %vm792, %v705
      %798 = vst.msk [vmem:[#allocation2 + $0x31] sm:$0xff] %vm790, %v707
      %799 = vst.msk [vmem:[#allocation2 + $0x39] sm:$0x7f] %vm792, %v709
      %800 = vst.msk [vmem:[#allocation2 + $0x41] sm:$0xff] %vm790, %v711
      %801 = vst.msk [vmem:[#allocation2 + $0x49] sm:$0x7f] %vm792, %v713
      %802 = vst.msk [vmem:[#allocation2 + $0x51] sm:$0xff] %vm790, %v715
      %803 = vst.msk [vmem:[#allocation2 + $0x59] sm:$0x7f] %vm792, %v717
      %804 = vst.msk [vmem:[#allocation2 + $0x61] sm:$0xff] %vm790, %v719
      %805 = vst.msk [vmem:[#allocation2 + $0x69] sm:$0x7f] %vm792, %v721
      %806 = vst.msk [vmem:[#allocation2 + $0x71] sm:$0xff] %vm790, %v723
      %807 = vst.msk [vmem:[#allocation2 + $0x79] sm:$0x7f] %vm792, %v725
      %808 = vst.msk [vmem:[#allocation2 + $0x81] sm:$0xff] %vm790, %v727
      %809 = vst.msk [vmem:[#allocation2 + $0x89] sm:$0x7f] %vm792, %v729
      %810 = vst.msk [vmem:[#allocation2 + $0x91] sm:$0xff] %vm790, %v731
      %811 = vst.msk [vmem:[#allocation2 + $0x99] sm:$0x7f] %vm792, %v733
      %812 = vst.msk [vmem:[#allocation2 + $0xa1] sm:$0xff] %vm790, %v735
      %813 = vst.msk [vmem:[#allocation2 + $0xa9] sm:$0x7f] %vm792, %v737
      %814 = vst.msk [vmem:[#allocation2 + $0xb1] sm:$0xff] %vm790, %v739
      %815 = vst.msk [vmem:[#allocation2 + $0xb9] sm:$0x7f] %vm792, %v741
      %816 = vst.msk [vmem:[#allocation2 + $0xc1] sm:$0xff] %vm790, %v743
      %817 = vst.msk [vmem:[#allocation2 + $0xc9] sm:$0x7f] %vm792, %v745
      %818 = vst.msk [vmem:[#allocation2 + $0xd1] sm:$0xff] %vm790, %v747
      %819 = vst.msk [vmem:[#allocation2 + $0xd9] sm:$0x7f] %vm792, %v749
      %820 = vst.msk [vmem:[#allocation2 + $0xe1] sm:$0xff] %vm790, %v751
      %821 = vst.msk [vmem:[#allocation2 + $0xe9] sm:$0x7f] %vm792, %v753
      %822 = vst.msk [vmem:[#allocation2 + $0xf1] sm:$0xff] %vm790, %v755
      %823 = vst.msk [vmem:[#allocation2 + $0xf9] sm:$0x7f] %vm792, %v757
      %v824 = vld [vmem:[%s165] sm:$0xff]
      %v825 = vld [vmem:[%s165 + $0x8] sm:$0xff]
      %v826 = vld [vmem:[%s165 + $0x10] sm:$0xff]
      %v827 = vld [vmem:[%s165 + $0x18] sm:$0xff]
      %v828 = vld [vmem:[%s165 + $0x20] sm:$0xff]
      %v829 = vld [vmem:[%s165 + $0x28] sm:$0xff]
      %v830 = vld [vmem:[%s165 + $0x30] sm:$0xff]
      %v831 = vld [vmem:[%s165 + $0x38] sm:$0xff]
      %v832 = vld [vmem:[%s165 + $0x40] sm:$0xff]
      %v833 = vld [vmem:[%s165 + $0x48] sm:$0xff]
      %v834 = vld [vmem:[%s165 + $0x50] sm:$0xff]
      %v835 = vld [vmem:[%s165 + $0x58] sm:$0xff]
      %v836 = vld [vmem:[%s165 + $0x60] sm:$0xff]
      %v837 = vld [vmem:[%s165 + $0x68] sm:$0xff]
      %v838 = vld [vmem:[%s165 + $0x70] sm:$0xff]
      %v839 = vld [vmem:[%s165 + $0x78] sm:$0xff]
      %v840 = vld [vmem:[%s165 + $0x80] sm:$0xff]
      %v841 = vld [vmem:[%s165 + $0x88] sm:$0xff]
      %v842 = vld [vmem:[%s165 + $0x90] sm:$0xff]
      %v843 = vld [vmem:[%s165 + $0x98] sm:$0xff]
      %v844 = vld [vmem:[%s165 + $0xa0] sm:$0xff]
      %v845 = vld [vmem:[%s165 + $0xa8] sm:$0xff]
      %v846 = vld [vmem:[%s165 + $0xb0] sm:$0xff]
      %v847 = vld [vmem:[%s165 + $0xb8] sm:$0xff]
      %v848 = vld [vmem:[%s165 + $0xc0] sm:$0xff]
      %v849 = vld [vmem:[%s165 + $0xc8] sm:$0xff]
      %v850 = vld [vmem:[%s165 + $0xd0] sm:$0xff]
      %v851 = vld [vmem:[%s165 + $0xd8] sm:$0xff]
      %v852 = vld [vmem:[%s165 + $0xe0] sm:$0xff]
      %v853 = vld [vmem:[%s165 + $0xe8] sm:$0xff]
      %v854 = vld [vmem:[%s165 + $0xf0] sm:$0xff]
      %v855 = vld [vmem:[%s165 + $0xf8] sm:$0xff]
      %888 = vrot.lane.b32.xlu0 %v824, 16
      %v889 = vpop.permute.xlu0 %888
      %890 = vrot.lane.b32.xlu0 %v825, 16
      %v891 = vpop.permute.xlu0 %890
      %892 = vrot.lane.b32.xlu0 %v826, 16
      %v893 = vpop.permute.xlu0 %892
      %894 = vrot.lane.b32.xlu0 %v827, 16
      %v895 = vpop.permute.xlu0 %894
      %896 = vrot.lane.b32.xlu0 %v828, 16
      %v897 = vpop.permute.xlu0 %896
      %898 = vrot.lane.b32.xlu0 %v829, 16
      %v899 = vpop.permute.xlu0 %898
      %900 = vrot.lane.b32.xlu0 %v830, 16
      %v901 = vpop.permute.xlu0 %900
      %902 = vrot.lane.b32.xlu0 %v831, 16
      %v903 = vpop.permute.xlu0 %902
      %904 = vrot.lane.b32.xlu0 %v832, 16
      %v905 = vpop.permute.xlu0 %904
      %906 = vrot.lane.b32.xlu0 %v833, 16
      %v907 = vpop.permute.xlu0 %906
      %908 = vrot.lane.b32.xlu0 %v834, 16
      %v909 = vpop.permute.xlu0 %908
      %910 = vrot.lane.b32.xlu0 %v835, 16
      %v911 = vpop.permute.xlu0 %910
      %912 = vrot.lane.b32.xlu0 %v836, 16
      %v913 = vpop.permute.xlu0 %912
      %914 = vrot.lane.b32.xlu0 %v837, 16
      %v915 = vpop.permute.xlu0 %914
      %916 = vrot.lane.b32.xlu0 %v838, 16
      %v917 = vpop.permute.xlu0 %916
      %918 = vrot.lane.b32.xlu0 %v839, 16
      %v919 = vpop.permute.xlu0 %918
      %920 = vrot.lane.b32.xlu0 %v840, 16
      %v921 = vpop.permute.xlu0 %920
      %922 = vrot.lane.b32.xlu0 %v841, 16
      %v923 = vpop.permute.xlu0 %922
      %924 = vrot.lane.b32.xlu0 %v842, 16
      %v925 = vpop.permute.xlu0 %924
      %926 = vrot.lane.b32.xlu0 %v843, 16
      %v927 = vpop.permute.xlu0 %926
      %928 = vrot.lane.b32.xlu0 %v844, 16
      %v929 = vpop.permute.xlu0 %928
      %930 = vrot.lane.b32.xlu0 %v845, 16
      %v931 = vpop.permute.xlu0 %930
      %932 = vrot.lane.b32.xlu0 %v846, 16
      %v933 = vpop.permute.xlu0 %932
      %934 = vrot.lane.b32.xlu0 %v847, 16
      %v935 = vpop.permute.xlu0 %934
      %936 = vrot.lane.b32.xlu0 %v848, 16
      %v937 = vpop.permute.xlu0 %936
      %938 = vrot.lane.b32.xlu0 %v849, 16
      %v939 = vpop.permute.xlu0 %938
      %940 = vrot.lane.b32.xlu0 %v850, 16
      %v941 = vpop.permute.xlu0 %940
      %942 = vrot.lane.b32.xlu0 %v851, 16
      %v943 = vpop.permute.xlu0 %942
      %944 = vrot.lane.b32.xlu0 %v852, 16
      %v945 = vpop.permute.xlu0 %944
      %946 = vrot.lane.b32.xlu0 %v853, 16
      %v947 = vpop.permute.xlu0 %946
      %948 = vrot.lane.b32.xlu0 %v854, 16
      %v949 = vpop.permute.xlu0 %948
      %950 = vrot.lane.b32.xlu0 %v855, 16
      %v951 = vpop.permute.xlu0 %950
      %vm984 = vcmask 162944
      %985 = vst.msk [vmem:[#allocation2] sm:$0xff] %vm984, %v889
      %986 = vst.msk [vmem:[#allocation2 + $0x8] sm:$0xff] %vm984, %v891
      %987 = vst.msk [vmem:[#allocation2 + $0x10] sm:$0xff] %vm984, %v893
      %988 = vst.msk [vmem:[#allocation2 + $0x18] sm:$0xff] %vm984, %v895
      %989 = vst.msk [vmem:[#allocation2 + $0x20] sm:$0xff] %vm984, %v897
      %990 = vst.msk [vmem:[#allocation2 + $0x28] sm:$0xff] %vm984, %v899
      %991 = vst.msk [vmem:[#allocation2 + $0x30] sm:$0xff] %vm984, %v901
      %992 = vst.msk [vmem:[#allocation2 + $0x38] sm:$0xff] %vm984, %v903
      %993 = vst.msk [vmem:[#allocation2 + $0x40] sm:$0xff] %vm984, %v905
      %994 = vst.msk [vmem:[#allocation2 + $0x48] sm:$0xff] %vm984, %v907
      %995 = vst.msk [vmem:[#allocation2 + $0x50] sm:$0xff] %vm984, %v909
      %996 = vst.msk [vmem:[#allocation2 + $0x58] sm:$0xff] %vm984, %v911
      %997 = vst.msk [vmem:[#allocation2 + $0x60] sm:$0xff] %vm984, %v913
      %998 = vst.msk [vmem:[#allocation2 + $0x68] sm:$0xff] %vm984, %v915
      %999 = vst.msk [vmem:[#allocation2 + $0x70] sm:$0xff] %vm984, %v917
      %1000 = vst.msk [vmem:[#allocation2 + $0x78] sm:$0xff] %vm984, %v919
      %1001 = vst.msk [vmem:[#allocation2 + $0x80] sm:$0xff] %vm984, %v921
      %1002 = vst.msk [vmem:[#allocation2 + $0x88] sm:$0xff] %vm984, %v923
      %1003 = vst.msk [vmem:[#allocation2 + $0x90] sm:$0xff] %vm984, %v925
      %1004 = vst.msk [vmem:[#allocation2 + $0x98] sm:$0xff] %vm984, %v927
      %1005 = vst.msk [vmem:[#allocation2 + $0xa0] sm:$0xff] %vm984, %v929
      %1006 = vst.msk [vmem:[#allocation2 + $0xa8] sm:$0xff] %vm984, %v931
      %1007 = vst.msk [vmem:[#allocation2 + $0xb0] sm:$0xff] %vm984, %v933
      %1008 = vst.msk [vmem:[#allocation2 + $0xb8] sm:$0xff] %vm984, %v935
      %1009 = vst.msk [vmem:[#allocation2 + $0xc0] sm:$0xff] %vm984, %v937
      %1010 = vst.msk [vmem:[#allocation2 + $0xc8] sm:$0xff] %vm984, %v939
      %1011 = vst.msk [vmem:[#allocation2 + $0xd0] sm:$0xff] %vm984, %v941
      %1012 = vst.msk [vmem:[#allocation2 + $0xd8] sm:$0xff] %vm984, %v943
      %1013 = vst.msk [vmem:[#allocation2 + $0xe0] sm:$0xff] %vm984, %v945
      %1014 = vst.msk [vmem:[#allocation2 + $0xe8] sm:$0xff] %vm984, %v947
      %1015 = vst.msk [vmem:[#allocation2 + $0xf0] sm:$0xff] %vm984, %v949
      %1016 = vst.msk [vmem:[#allocation2 + $0xf8] sm:$0xff] %vm984, %v951
      %v1017 = vld [vmem:[%s165 + $0x1] sm:$0xff]
      %v1018 = vld [vmem:[%s165 + $0x9] sm:$0x7f]
      %v1019 = vld [vmem:[%s165 + $0x11] sm:$0xff]
      %v1020 = vld [vmem:[%s165 + $0x19] sm:$0x7f]
      %v1021 = vld [vmem:[%s165 + $0x21] sm:$0xff]
      %v1022 = vld [vmem:[%s165 + $0x29] sm:$0x7f]
      %v1023 = vld [vmem:[%s165 + $0x31] sm:$0xff]
      %v1024 = vld [vmem:[%s165 + $0x39] sm:$0x7f]
      %v1025 = vld [vmem:[%s165 + $0x41] sm:$0xff]
      %v1026 = vld [vmem:[%s165 + $0x49] sm:$0x7f]
      %v1027 = vld [vmem:[%s165 + $0x51] sm:$0xff]
      %v1028 = vld [vmem:[%s165 + $0x59] sm:$0x7f]
      %v1029 = vld [vmem:[%s165 + $0x61] sm:$0xff]
      %v1030 = vld [vmem:[%s165 + $0x69] sm:$0x7f]
      %v1031 = vld [vmem:[%s165 + $0x71] sm:$0xff]
      %v1032 = vld [vmem:[%s165 + $0x79] sm:$0x7f]
      %v1033 = vld [vmem:[%s165 + $0x81] sm:$0xff]
      %v1034 = vld [vmem:[%s165 + $0x89] sm:$0x7f]
      %v1035 = vld [vmem:[%s165 + $0x91] sm:$0xff]
      %v1036 = vld [vmem:[%s165 + $0x99] sm:$0x7f]
      %v1037 = vld [vmem:[%s165 + $0xa1] sm:$0xff]
      %v1038 = vld [vmem:[%s165 + $0xa9] sm:$0x7f]
      %v1039 = vld [vmem:[%s165 + $0xb1] sm:$0xff]
      %v1040 = vld [vmem:[%s165 + $0xb9] sm:$0x7f]
      %v1041 = vld [vmem:[%s165 + $0xc1] sm:$0xff]
      %v1042 = vld [vmem:[%s165 + $0xc9] sm:$0x7f]
      %v1043 = vld [vmem:[%s165 + $0xd1] sm:$0xff]
      %v1044 = vld [vmem:[%s165 + $0xd9] sm:$0x7f]
      %v1045 = vld [vmem:[%s165 + $0xe1] sm:$0xff]
      %v1046 = vld [vmem:[%s165 + $0xe9] sm:$0x7f]
      %v1047 = vld [vmem:[%s165 + $0xf1] sm:$0xff]
      %v1048 = vld [vmem:[%s165 + $0xf9] sm:$0x7f]
      %1081 = vrot.lane.b32.xlu0 %v1017, 20
      %v1082 = vpop.permute.xlu0 %1081
      %1083 = vrot.lane.b32.xlu0 %v1018, 20
      %v1084 = vpop.permute.xlu0 %1083
      %1085 = vrot.lane.b32.xlu0 %v1019, 20
      %v1086 = vpop.permute.xlu0 %1085
      %1087 = vrot.lane.b32.xlu0 %v1020, 20
      %v1088 = vpop.permute.xlu0 %1087
      %1089 = vrot.lane.b32.xlu0 %v1021, 20
      %v1090 = vpop.permute.xlu0 %1089
      %1091 = vrot.lane.b32.xlu0 %v1022, 20
      %v1092 = vpop.permute.xlu0 %1091
      %1093 = vrot.lane.b32.xlu0 %v1023, 20
      %v1094 = vpop.permute.xlu0 %1093
      %1095 = vrot.lane.b32.xlu0 %v1024, 20
      %v1096 = vpop.permute.xlu0 %1095
      %1097 = vrot.lane.b32.xlu0 %v1025, 20
      %v1098 = vpop.permute.xlu0 %1097
      %1099 = vrot.lane.b32.xlu0 %v1026, 20
      %v1100 = vpop.permute.xlu0 %1099
      %1101 = vrot.lane.b32.xlu0 %v1027, 20
      %v1102 = vpop.permute.xlu0 %1101
      %1103 = vrot.lane.b32.xlu0 %v1028, 20
      %v1104 = vpop.permute.xlu0 %1103
      %1105 = vrot.lane.b32.xlu0 %v1029, 20
      %v1106 = vpop.permute.xlu0 %1105
      %1107 = vrot.lane.b32.xlu0 %v1030, 20
      %v1108 = vpop.permute.xlu0 %1107
      %1109 = vrot.lane.b32.xlu0 %v1031, 20
      %v1110 = vpop.permute.xlu0 %1109
      %1111 = vrot.lane.b32.xlu0 %v1032, 20
      %v1112 = vpop.permute.xlu0 %1111
      %1113 = vrot.lane.b32.xlu0 %v1033, 20
      %v1114 = vpop.permute.xlu0 %1113
      %1115 = vrot.lane.b32.xlu0 %v1034, 20
      %v1116 = vpop.permute.xlu0 %1115
      %1117 = vrot.lane.b32.xlu0 %v1035, 20
      %v1118 = vpop.permute.xlu0 %1117
      %1119 = vrot.lane.b32.xlu0 %v1036, 20
      %v1120 = vpop.permute.xlu0 %1119
      %1121 = vrot.lane.b32.xlu0 %v1037, 20
      %v1122 = vpop.permute.xlu0 %1121
      %1123 = vrot.lane.b32.xlu0 %v1038, 20
      %v1124 = vpop.permute.xlu0 %1123
      %1125 = vrot.lane.b32.xlu0 %v1039, 20
      %v1126 = vpop.permute.xlu0 %1125
      %1127 = vrot.lane.b32.xlu0 %v1040, 20
      %v1128 = vpop.permute.xlu0 %1127
      %1129 = vrot.lane.b32.xlu0 %v1041, 20
      %v1130 = vpop.permute.xlu0 %1129
      %1131 = vrot.lane.b32.xlu0 %v1042, 20
      %v1132 = vpop.permute.xlu0 %1131
      %1133 = vrot.lane.b32.xlu0 %v1043, 20
      %v1134 = vpop.permute.xlu0 %1133
      %1135 = vrot.lane.b32.xlu0 %v1044, 20
      %v1136 = vpop.permute.xlu0 %1135
      %1137 = vrot.lane.b32.xlu0 %v1045, 20
      %v1138 = vpop.permute.xlu0 %1137
      %1139 = vrot.lane.b32.xlu0 %v1046, 20
      %v1140 = vpop.permute.xlu0 %1139
      %1141 = vrot.lane.b32.xlu0 %v1047, 20
      %v1142 = vpop.permute.xlu0 %1141
      %1143 = vrot.lane.b32.xlu0 %v1048, 20
      %v1144 = vpop.permute.xlu0 %1143
      %vm1177 = vcmask 195744
      %1178 = vst.msk [vmem:[#allocation2] sm:$0xff] %vm1177, %v1082
      %vm1179 = vcmask 194720
      %1180 = vst.msk [vmem:[#allocation2 + $0x8] sm:$0x7f] %vm1179, %v1084
      %1181 = vst.msk [vmem:[#allocation2 + $0x10] sm:$0xff] %vm1177, %v1086
      %1182 = vst.msk [vmem:[#allocation2 + $0x18] sm:$0x7f] %vm1179, %v1088
      %1183 = vst.msk [vmem:[#allocation2 + $0x20] sm:$0xff] %vm1177, %v1090
      %1184 = vst.msk [vmem:[#allocation2 + $0x28] sm:$0x7f] %vm1179, %v1092
      %1185 = vst.msk [vmem:[#allocation2 + $0x30] sm:$0xff] %vm1177, %v1094
      %1186 = vst.msk [vmem:[#allocation2 + $0x38] sm:$0x7f] %vm1179, %v1096
      %1187 = vst.msk [vmem:[#allocation2 + $0x40] sm:$0xff] %vm1177, %v1098
      %1188 = vst.msk [vmem:[#allocation2 + $0x48] sm:$0x7f] %vm1179, %v1100
      %1189 = vst.msk [vmem:[#allocation2 + $0x50] sm:$0xff] %vm1177, %v1102
      %1190 = vst.msk [vmem:[#allocation2 + $0x58] sm:$0x7f] %vm1179, %v1104
      %1191 = vst.msk [vmem:[#allocation2 + $0x60] sm:$0xff] %vm1177, %v1106
      %1192 = vst.msk [vmem:[#allocation2 + $0x68] sm:$0x7f] %vm1179, %v1108
      %1193 = vst.msk [vmem:[#allocation2 + $0x70] sm:$0xff] %vm1177, %v1110
      %1194 = vst.msk [vmem:[#allocation2 + $0x78] sm:$0x7f] %vm1179, %v1112
      %1195 = vst.msk [vmem:[#allocation2 + $0x80] sm:$0xff] %vm1177, %v1114
      %1196 = vst.msk [vmem:[#allocation2 + $0x88] sm:$0x7f] %vm1179, %v1116
      %1197 = vst.msk [vmem:[#allocation2 + $0x90] sm:$0xff] %vm1177, %v1118
      %1198 = vst.msk [vmem:[#allocation2 + $0x98] sm:$0x7f] %vm1179, %v1120
      %1199 = vst.msk [vmem:[#allocation2 + $0xa0] sm:$0xff] %vm1177, %v1122
      %1200 = vst.msk [vmem:[#allocation2 + $0xa8] sm:$0x7f] %vm1179, %v1124
      %1201 = vst.msk [vmem:[#allocation2 + $0xb0] sm:$0xff] %vm1177, %v1126
      %1202 = vst.msk [vmem:[#allocation2 + $0xb8] sm:$0x7f] %vm1179, %v1128
      %1203 = vst.msk [vmem:[#allocation2 + $0xc0] sm:$0xff] %vm1177, %v1130
      %1204 = vst.msk [vmem:[#allocation2 + $0xc8] sm:$0x7f] %vm1179, %v1132
      %1205 = vst.msk [vmem:[#allocation2 + $0xd0] sm:$0xff] %vm1177, %v1134
      %1206 = vst.msk [vmem:[#allocation2 + $0xd8] sm:$0x7f] %vm1179, %v1136
      %1207 = vst.msk [vmem:[#allocation2 + $0xe0] sm:$0xff] %vm1177, %v1138
      %1208 = vst.msk [vmem:[#allocation2 + $0xe8] sm:$0x7f] %vm1179, %v1140
      %1209 = vst.msk [vmem:[#allocation2 + $0xf0] sm:$0xff] %vm1177, %v1142
      %1210 = vst.msk [vmem:[#allocation2 + $0xf8] sm:$0x7f] %vm1179, %v1144
      %s1211 = scalar_lea.vmem %s165, 16
      %v1212 = vld [vmem:[%s1211] sm:$0xff]
      %v1213 = vld [vmem:[%s1211 + $0x8] sm:$0x7f]
      %v1214 = vld [vmem:[%s1211 + $0x10] sm:$0xff]
      %v1215 = vld [vmem:[%s1211 + $0x18] sm:$0x7f]
      %v1216 = vld [vmem:[%s1211 + $0x20] sm:$0xff]
      %v1217 = vld [vmem:[%s1211 + $0x28] sm:$0x7f]
      %v1218 = vld [vmem:[%s1211 + $0x30] sm:$0xff]
      %v1219 = vld [vmem:[%s1211 + $0x38] sm:$0x7f]
      %v1220 = vld [vmem:[%s1211 + $0x40] sm:$0xff]
      %v1221 = vld [vmem:[%s1211 + $0x48] sm:$0x7f]
      %v1222 = vld [vmem:[%s1211 + $0x50] sm:$0xff]
      %v1223 = vld [vmem:[%s1211 + $0x58] sm:$0x7f]
      %v1224 = vld [vmem:[%s1211 + $0x60] sm:$0xff]
      %v1225 = vld [vmem:[%s1211 + $0x68] sm:$0x7f]
      %v1226 = vld [vmem:[%s1211 + $0x70] sm:$0xff]
      %v1227 = vld [vmem:[%s1211 + $0x78] sm:$0x7f]
      %v1228 = vld [vmem:[%s1211 + $0x80] sm:$0xff]
      %v1229 = vld [vmem:[%s1211 + $0x88] sm:$0x7f]
      %v1230 = vld [vmem:[%s1211 + $0x90] sm:$0xff]
      %v1231 = vld [vmem:[%s1211 + $0x98] sm:$0x7f]
      %v1232 = vld [vmem:[%s1211 + $0xa0] sm:$0xff]
      %v1233 = vld [vmem:[%s1211 + $0xa8] sm:$0x7f]
      %v1234 = vld [vmem:[%s1211 + $0xb0] sm:$0xff]
      %v1235 = vld [vmem:[%s1211 + $0xb8] sm:$0x7f]
      %v1236 = vld [vmem:[%s1211 + $0xc0] sm:$0xff]
      %v1237 = vld [vmem:[%s1211 + $0xc8] sm:$0x7f]
      %v1238 = vld [vmem:[%s1211 + $0xd0] sm:$0xff]
      %v1239 = vld [vmem:[%s1211 + $0xd8] sm:$0x7f]
      %v1240 = vld [vmem:[%s1211 + $0xe0] sm:$0xff]
      %v1241 = vld [vmem:[%s1211 + $0xe8] sm:$0x7f]
      %1272 = vrot.lane.b32.xlu0 %v1212, 24
      %v1273 = vpop.permute.xlu0 %1272
      %1274 = vrot.lane.b32.xlu0 %v1213, 24
      %v1275 = vpop.permute.xlu0 %1274
      %1276 = vrot.lane.b32.xlu0 %v1214, 24
      %v1277 = vpop.permute.xlu0 %1276
      %1278 = vrot.lane.b32.xlu0 %v1215, 24
      %v1279 = vpop.permute.xlu0 %1278
      %1280 = vrot.lane.b32.xlu0 %v1216, 24
      %v1281 = vpop.permute.xlu0 %1280
      %1282 = vrot.lane.b32.xlu0 %v1217, 24
      %v1283 = vpop.permute.xlu0 %1282
      %1284 = vrot.lane.b32.xlu0 %v1218, 24
      %v1285 = vpop.permute.xlu0 %1284
      %1286 = vrot.lane.b32.xlu0 %v1219, 24
      %v1287 = vpop.permute.xlu0 %1286
      %1288 = vrot.lane.b32.xlu0 %v1220, 24
      %v1289 = vpop.permute.xlu0 %1288
      %1290 = vrot.lane.b32.xlu0 %v1221, 24
      %v1291 = vpop.permute.xlu0 %1290
      %1292 = vrot.lane.b32.xlu0 %v1222, 24
      %v1293 = vpop.permute.xlu0 %1292
      %1294 = vrot.lane.b32.xlu0 %v1223, 24
      %v1295 = vpop.permute.xlu0 %1294
      %1296 = vrot.lane.b32.xlu0 %v1224, 24
      %v1297 = vpop.permute.xlu0 %1296
      %1298 = vrot.lane.b32.xlu0 %v1225, 24
      %v1299 = vpop.permute.xlu0 %1298
      %1300 = vrot.lane.b32.xlu0 %v1226, 24
      %v1301 = vpop.permute.xlu0 %1300
      %1302 = vrot.lane.b32.xlu0 %v1227, 24
      %v1303 = vpop.permute.xlu0 %1302
      %1304 = vrot.lane.b32.xlu0 %v1228, 24
      %v1305 = vpop.permute.xlu0 %1304
      %1306 = vrot.lane.b32.xlu0 %v1229, 24
      %v1307 = vpop.permute.xlu0 %1306
      %1308 = vrot.lane.b32.xlu0 %v1230, 24
      %v1309 = vpop.permute.xlu0 %1308
      %1310 = vrot.lane.b32.xlu0 %v1231, 24
      %v1311 = vpop.permute.xlu0 %1310
      %1312 = vrot.lane.b32.xlu0 %v1232, 24
      %v1313 = vpop.permute.xlu0 %1312
      %1314 = vrot.lane.b32.xlu0 %v1233, 24
      %v1315 = vpop.permute.xlu0 %1314
      %1316 = vrot.lane.b32.xlu0 %v1234, 24
      %v1317 = vpop.permute.xlu0 %1316
      %1318 = vrot.lane.b32.xlu0 %v1235, 24
      %v1319 = vpop.permute.xlu0 %1318
      %1320 = vrot.lane.b32.xlu0 %v1236, 24
      %v1321 = vpop.permute.xlu0 %1320
      %1322 = vrot.lane.b32.xlu0 %v1237, 24
      %v1323 = vpop.permute.xlu0 %1322
      %1324 = vrot.lane.b32.xlu0 %v1238, 24
      %v1325 = vpop.permute.xlu0 %1324
      %1326 = vrot.lane.b32.xlu0 %v1239, 24
      %v1327 = vpop.permute.xlu0 %1326
      %1328 = vrot.lane.b32.xlu0 %v1240, 24
      %v1329 = vpop.permute.xlu0 %1328
      %1330 = vrot.lane.b32.xlu0 %v1241, 24
      %v1331 = vpop.permute.xlu0 %1330
      %vm1362 = vcmask 228544
      %1363 = vst.msk [vmem:[#allocation2 + $0x1] sm:$0xff] %vm1362, %v1273
      %vm1364 = vcmask 227520
      %1365 = vst.msk [vmem:[#allocation2 + $0x9] sm:$0x7f] %vm1364, %v1275
      %1366 = vst.msk [vmem:[#allocation2 + $0x11] sm:$0xff] %vm1362, %v1277
      %1367 = vst.msk [vmem:[#allocation2 + $0x19] sm:$0x7f] %vm1364, %v1279
      %1368 = vst.msk [vmem:[#allocation2 + $0x21] sm:$0xff] %vm1362, %v1281
      %1369 = vst.msk [vmem:[#allocation2 + $0x29] sm:$0x7f] %vm1364, %v1283
      %1370 = vst.msk [vmem:[#allocation2 + $0x31] sm:$0xff] %vm1362, %v1285
      %1371 = vst.msk [vmem:[#allocation2 + $0x39] sm:$0x7f] %vm1364, %v1287
      %1372 = vst.msk [vmem:[#allocation2 + $0x41] sm:$0xff] %vm1362, %v1289
      %1373 = vst.msk [vmem:[#allocation2 + $0x49] sm:$0x7f] %vm1364, %v1291
      %1374 = vst.msk [vmem:[#allocation2 + $0x51] sm:$0xff] %vm1362, %v1293
      %1375 = vst.msk [vmem:[#allocation2 + $0x59] sm:$0x7f] %vm1364, %v1295
      %1376 = vst.msk [vmem:[#allocation2 + $0x61] sm:$0xff] %vm1362, %v1297
      %1377 = vst.msk [vmem:[#allocation2 + $0x69] sm:$0x7f] %vm1364, %v1299
      %1378 = vst.msk [vmem:[#allocation2 + $0x71] sm:$0xff] %vm1362, %v1301
      %1379 = vst.msk [vmem:[#allocation2 + $0x79] sm:$0x7f] %vm1364, %v1303
      %1380 = vst.msk [vmem:[#allocation2 + $0x81] sm:$0xff] %vm1362, %v1305
      %1381 = vst.msk [vmem:[#allocation2 + $0x89] sm:$0x7f] %vm1364, %v1307
      %1382 = vst.msk [vmem:[#allocation2 + $0x91] sm:$0xff] %vm1362, %v1309
      %1383 = vst.msk [vmem:[#allocation2 + $0x99] sm:$0x7f] %vm1364, %v1311
      %1384 = vst.msk [vmem:[#allocation2 + $0xa1] sm:$0xff] %vm1362, %v1313
      %1385 = vst.msk [vmem:[#allocation2 + $0xa9] sm:$0x7f] %vm1364, %v1315
      %1386 = vst.msk [vmem:[#allocation2 + $0xb1] sm:$0xff] %vm1362, %v1317
      %1387 = vst.msk [vmem:[#allocation2 + $0xb9] sm:$0x7f] %vm1364, %v1319
      %1388 = vst.msk [vmem:[#allocation2 + $0xc1] sm:$0xff] %vm1362, %v1321
      %1389 = vst.msk [vmem:[#allocation2 + $0xc9] sm:$0x7f] %vm1364, %v1323
      %1390 = vst.msk [vmem:[#allocation2 + $0xd1] sm:$0xff] %vm1362, %v1325
      %1391 = vst.msk [vmem:[#allocation2 + $0xd9] sm:$0x7f] %vm1364, %v1327
      %1392 = vst.msk [vmem:[#allocation2 + $0xe1] sm:$0xff] %vm1362, %v1329
      %1393 = vst.msk [vmem:[#allocation2 + $0xe9] sm:$0x7f] %vm1364, %v1331
      %v1394 = vld [vmem:[%s1211] sm:$0xff]
      %v1395 = vld [vmem:[%s1211 + $0x8] sm:$0xff]
      %v1396 = vld [vmem:[%s1211 + $0x10] sm:$0xff]
      %v1397 = vld [vmem:[%s1211 + $0x18] sm:$0xff]
      %v1398 = vld [vmem:[%s1211 + $0x20] sm:$0xff]
      %v1399 = vld [vmem:[%s1211 + $0x28] sm:$0xff]
      %v1400 = vld [vmem:[%s1211 + $0x30] sm:$0xff]
      %v1401 = vld [vmem:[%s1211 + $0x38] sm:$0xff]
      %v1402 = vld [vmem:[%s1211 + $0x40] sm:$0xff]
      %v1403 = vld [vmem:[%s1211 + $0x48] sm:$0xff]
      %v1404 = vld [vmem:[%s1211 + $0x50] sm:$0xff]
      %v1405 = vld [vmem:[%s1211 + $0x58] sm:$0xff]
      %v1406 = vld [vmem:[%s1211 + $0x60] sm:$0xff]
      %v1407 = vld [vmem:[%s1211 + $0x68] sm:$0xff]
      %v1408 = vld [vmem:[%s1211 + $0x70] sm:$0xff]
      %v1409 = vld [vmem:[%s1211 + $0x78] sm:$0xff]
      %v1410 = vld [vmem:[%s1211 + $0x80] sm:$0xff]
      %v1411 = vld [vmem:[%s1211 + $0x88] sm:$0xff]
      %v1412 = vld [vmem:[%s1211 + $0x90] sm:$0xff]
      %v1413 = vld [vmem:[%s1211 + $0x98] sm:$0xff]
      %v1414 = vld [vmem:[%s1211 + $0xa0] sm:$0xff]
      %v1415 = vld [vmem:[%s1211 + $0xa8] sm:$0xff]
      %v1416 = vld [vmem:[%s1211 + $0xb0] sm:$0xff]
      %v1417 = vld [vmem:[%s1211 + $0xb8] sm:$0xff]
      %v1418 = vld [vmem:[%s1211 + $0xc0] sm:$0xff]
      %v1419 = vld [vmem:[%s1211 + $0xc8] sm:$0xff]
      %v1420 = vld [vmem:[%s1211 + $0xd0] sm:$0xff]
      %v1421 = vld [vmem:[%s1211 + $0xd8] sm:$0xff]
      %v1422 = vld [vmem:[%s1211 + $0xe0] sm:$0xff]
      %v1423 = vld [vmem:[%s1211 + $0xe8] sm:$0xff]
      %1454 = vrot.lane.b32.xlu0 %v1394, 28
      %v1455 = vpop.permute.xlu0 %1454
      %1456 = vrot.lane.b32.xlu0 %v1395, 28
      %v1457 = vpop.permute.xlu0 %1456
      %1458 = vrot.lane.b32.xlu0 %v1396, 28
      %v1459 = vpop.permute.xlu0 %1458
      %1460 = vrot.lane.b32.xlu0 %v1397, 28
      %v1461 = vpop.permute.xlu0 %1460
      %1462 = vrot.lane.b32.xlu0 %v1398, 28
      %v1463 = vpop.permute.xlu0 %1462
      %1464 = vrot.lane.b32.xlu0 %v1399, 28
      %v1465 = vpop.permute.xlu0 %1464
      %1466 = vrot.lane.b32.xlu0 %v1400, 28
      %v1467 = vpop.permute.xlu0 %1466
      %1468 = vrot.lane.b32.xlu0 %v1401, 28
      %v1469 = vpop.permute.xlu0 %1468
      %1470 = vrot.lane.b32.xlu0 %v1402, 28
      %v1471 = vpop.permute.xlu0 %1470
      %1472 = vrot.lane.b32.xlu0 %v1403, 28
      %v1473 = vpop.permute.xlu0 %1472
      %1474 = vrot.lane.b32.xlu0 %v1404, 28
      %v1475 = vpop.permute.xlu0 %1474
      %1476 = vrot.lane.b32.xlu0 %v1405, 28
      %v1477 = vpop.permute.xlu0 %1476
      %1478 = vrot.lane.b32.xlu0 %v1406, 28
      %v1479 = vpop.permute.xlu0 %1478
      %1480 = vrot.lane.b32.xlu0 %v1407, 28
      %v1481 = vpop.permute.xlu0 %1480
      %1482 = vrot.lane.b32.xlu0 %v1408, 28
      %v1483 = vpop.permute.xlu0 %1482
      %1484 = vrot.lane.b32.xlu0 %v1409, 28
      %v1485 = vpop.permute.xlu0 %1484
      %1486 = vrot.lane.b32.xlu0 %v1410, 28
      %v1487 = vpop.permute.xlu0 %1486
      %1488 = vrot.lane.b32.xlu0 %v1411, 28
      %v1489 = vpop.permute.xlu0 %1488
      %1490 = vrot.lane.b32.xlu0 %v1412, 28
      %v1491 = vpop.permute.xlu0 %1490
      %1492 = vrot.lane.b32.xlu0 %v1413, 28
      %v1493 = vpop.permute.xlu0 %1492
      %1494 = vrot.lane.b32.xlu0 %v1414, 28
      %v1495 = vpop.permute.xlu0 %1494
      %1496 = vrot.lane.b32.xlu0 %v1415, 28
      %v1497 = vpop.permute.xlu0 %1496
      %1498 = vrot.lane.b32.xlu0 %v1416, 28
      %v1499 = vpop.permute.xlu0 %1498
      %1500 = vrot.lane.b32.xlu0 %v1417, 28
      %v1501 = vpop.permute.xlu0 %1500
      %1502 = vrot.lane.b32.xlu0 %v1418, 28
      %v1503 = vpop.permute.xlu0 %1502
      %1504 = vrot.lane.b32.xlu0 %v1419, 28
      %v1505 = vpop.permute.xlu0 %1504
      %1506 = vrot.lane.b32.xlu0 %v1420, 28
      %v1507 = vpop.permute.xlu0 %1506
      %1508 = vrot.lane.b32.xlu0 %v1421, 28
      %v1509 = vpop.permute.xlu0 %1508
      %1510 = vrot.lane.b32.xlu0 %v1422, 28
      %v1511 = vpop.permute.xlu0 %1510
      %1512 = vrot.lane.b32.xlu0 %v1423, 28
      %v1513 = vpop.permute.xlu0 %1512
      %vm1544 = vcmask 261344
      %1545 = vst.msk [vmem:[#allocation2] sm:$0xff] %vm1544, %v1455
      %1546 = vst.msk [vmem:[#allocation2 + $0x8] sm:$0xff] %vm1544, %v1457
      %1547 = vst.msk [vmem:[#allocation2 + $0x10] sm:$0xff] %vm1544, %v1459
      %1548 = vst.msk [vmem:[#allocation2 + $0x18] sm:$0xff] %vm1544, %v1461
      %1549 = vst.msk [vmem:[#allocation2 + $0x20] sm:$0xff] %vm1544, %v1463
      %1550 = vst.msk [vmem:[#allocation2 + $0x28] sm:$0xff] %vm1544, %v1465
      %1551 = vst.msk [vmem:[#allocation2 + $0x30] sm:$0xff] %vm1544, %v1467
      %1552 = vst.msk [vmem:[#allocation2 + $0x38] sm:$0xff] %vm1544, %v1469
      %1553 = vst.msk [vmem:[#allocation2 + $0x40] sm:$0xff] %vm1544, %v1471
      %1554 = vst.msk [vmem:[#allocation2 + $0x48] sm:$0xff] %vm1544, %v1473
      %1555 = vst.msk [vmem:[#allocation2 + $0x50] sm:$0xff] %vm1544, %v1475
      %1556 = vst.msk [vmem:[#allocation2 + $0x58] sm:$0xff] %vm1544, %v1477
      %1557 = vst.msk [vmem:[#allocation2 + $0x60] sm:$0xff] %vm1544, %v1479
      %1558 = vst.msk [vmem:[#allocation2 + $0x68] sm:$0xff] %vm1544, %v1481
      %1559 = vst.msk [vmem:[#allocation2 + $0x70] sm:$0xff] %vm1544, %v1483
      %1560 = vst.msk [vmem:[#allocation2 + $0x78] sm:$0xff] %vm1544, %v1485
      %1561 = vst.msk [vmem:[#allocation2 + $0x80] sm:$0xff] %vm1544, %v1487
      %1562 = vst.msk [vmem:[#allocation2 + $0x88] sm:$0xff] %vm1544, %v1489
      %1563 = vst.msk [vmem:[#allocation2 + $0x90] sm:$0xff] %vm1544, %v1491
      %1564 = vst.msk [vmem:[#allocation2 + $0x98] sm:$0xff] %vm1544, %v1493
      %1565 = vst.msk [vmem:[#allocation2 + $0xa0] sm:$0xff] %vm1544, %v1495
      %1566 = vst.msk [vmem:[#allocation2 + $0xa8] sm:$0xff] %vm1544, %v1497
      %1567 = vst.msk [vmem:[#allocation2 + $0xb0] sm:$0xff] %vm1544, %v1499
      %1568 = vst.msk [vmem:[#allocation2 + $0xb8] sm:$0xff] %vm1544, %v1501
      %1569 = vst.msk [vmem:[#allocation2 + $0xc0] sm:$0xff] %vm1544, %v1503
      %1570 = vst.msk [vmem:[#allocation2 + $0xc8] sm:$0xff] %vm1544, %v1505
      %1571 = vst.msk [vmem:[#allocation2 + $0xd0] sm:$0xff] %vm1544, %v1507
      %1572 = vst.msk [vmem:[#allocation2 + $0xd8] sm:$0xff] %vm1544, %v1509
      %1573 = vst.msk [vmem:[#allocation2 + $0xe0] sm:$0xff] %vm1544, %v1511
      %1574 = vst.msk [vmem:[#allocation2 + $0xe8] sm:$0xff] %vm1544, %v1513
      %v1575 = vld [vmem:[%s1211 + $0x1] sm:$0xff]
      %v1576 = vld [vmem:[%s1211 + $0x9] sm:$0x7f]
      %v1577 = vld [vmem:[%s1211 + $0x11] sm:$0xff]
      %v1578 = vld [vmem:[%s1211 + $0x19] sm:$0x7f]
      %v1579 = vld [vmem:[%s1211 + $0x21] sm:$0xff]
      %v1580 = vld [vmem:[%s1211 + $0x29] sm:$0x7f]
      %v1581 = vld [vmem:[%s1211 + $0x31] sm:$0xff]
      %v1582 = vld [vmem:[%s1211 + $0x39] sm:$0x7f]
      %v1583 = vld [vmem:[%s1211 + $0x41] sm:$0xff]
      %v1584 = vld [vmem:[%s1211 + $0x49] sm:$0x7f]
      %v1585 = vld [vmem:[%s1211 + $0x51] sm:$0xff]
      %v1586 = vld [vmem:[%s1211 + $0x59] sm:$0x7f]
      %v1587 = vld [vmem:[%s1211 + $0x61] sm:$0xff]
      %v1588 = vld [vmem:[%s1211 + $0x69] sm:$0x7f]
      %v1589 = vld [vmem:[%s1211 + $0x71] sm:$0xff]
      %v1590 = vld [vmem:[%s1211 + $0x79] sm:$0x7f]
      %v1591 = vld [vmem:[%s1211 + $0x81] sm:$0xff]
      %v1592 = vld [vmem:[%s1211 + $0x89] sm:$0x7f]
      %v1593 = vld [vmem:[%s1211 + $0x91] sm:$0xff]
      %v1594 = vld [vmem:[%s1211 + $0x99] sm:$0x7f]
      %v1595 = vld [vmem:[%s1211 + $0xa1] sm:$0xff]
      %v1596 = vld [vmem:[%s1211 + $0xa9] sm:$0x7f]
      %v1597 = vld [vmem:[%s1211 + $0xb1] sm:$0xff]
      %v1598 = vld [vmem:[%s1211 + $0xb9] sm:$0x7f]
      %v1599 = vld [vmem:[%s1211 + $0xc1] sm:$0xff]
      %v1600 = vld [vmem:[%s1211 + $0xc9] sm:$0x7f]
      %v1601 = vld [vmem:[%s1211 + $0xd1] sm:$0xff]
      %v1602 = vld [vmem:[%s1211 + $0xd9] sm:$0x7f]
      %v1603 = vld [vmem:[%s1211 + $0xe1] sm:$0xff]
      %v1604 = vld [vmem:[%s1211 + $0xe9] sm:$0x7f]
      %1635 = vrot.lane.b32.xlu0 %v1575, 32
      %v1636 = vpop.permute.xlu0 %1635
      %1637 = vrot.lane.b32.xlu0 %v1576, 32
      %v1638 = vpop.permute.xlu0 %1637
      %1639 = vrot.lane.b32.xlu0 %v1577, 32
      %v1640 = vpop.permute.xlu0 %1639
      %1641 = vrot.lane.b32.xlu0 %v1578, 32
      %v1642 = vpop.permute.xlu0 %1641
      %1643 = vrot.lane.b32.xlu0 %v1579, 32
      %v1644 = vpop.permute.xlu0 %1643
      %1645 = vrot.lane.b32.xlu0 %v1580, 32
      %v1646 = vpop.permute.xlu0 %1645
      %1647 = vrot.lane.b32.xlu0 %v1581, 32
      %v1648 = vpop.permute.xlu0 %1647
      %1649 = vrot.lane.b32.xlu0 %v1582, 32
      %v1650 = vpop.permute.xlu0 %1649
      %1651 = vrot.lane.b32.xlu0 %v1583, 32
      %v1652 = vpop.permute.xlu0 %1651
      %1653 = vrot.lane.b32.xlu0 %v1584, 32
      %v1654 = vpop.permute.xlu0 %1653
      %1655 = vrot.lane.b32.xlu0 %v1585, 32
      %v1656 = vpop.permute.xlu0 %1655
      %1657 = vrot.lane.b32.xlu0 %v1586, 32
      %v1658 = vpop.permute.xlu0 %1657
      %1659 = vrot.lane.b32.xlu0 %v1587, 32
      %v1660 = vpop.permute.xlu0 %1659
      %1661 = vrot.lane.b32.xlu0 %v1588, 32
      %v1662 = vpop.permute.xlu0 %1661
      %1663 = vrot.lane.b32.xlu0 %v1589, 32
      %v1664 = vpop.permute.xlu0 %1663
      %1665 = vrot.lane.b32.xlu0 %v1590, 32
      %v1666 = vpop.permute.xlu0 %1665
      %1667 = vrot.lane.b32.xlu0 %v1591, 32
      %v1668 = vpop.permute.xlu0 %1667
      %1669 = vrot.lane.b32.xlu0 %v1592, 32
      %v1670 = vpop.permute.xlu0 %1669
      %1671 = vrot.lane.b32.xlu0 %v1593, 32
      %v1672 = vpop.permute.xlu0 %1671
      %1673 = vrot.lane.b32.xlu0 %v1594, 32
      %v1674 = vpop.permute.xlu0 %1673
      %1675 = vrot.lane.b32.xlu0 %v1595, 32
      %v1676 = vpop.permute.xlu0 %1675
      %1677 = vrot.lane.b32.xlu0 %v1596, 32
      %v1678 = vpop.permute.xlu0 %1677
      %1679 = vrot.lane.b32.xlu0 %v1597, 32
      %v1680 = vpop.permute.xlu0 %1679
      %1681 = vrot.lane.b32.xlu0 %v1598, 32
      %v1682 = vpop.permute.xlu0 %1681
      %1683 = vrot.lane.b32.xlu0 %v1599, 32
      %v1684 = vpop.permute.xlu0 %1683
      %1685 = vrot.lane.b32.xlu0 %v1600, 32
      %v1686 = vpop.permute.xlu0 %1685
      %1687 = vrot.lane.b32.xlu0 %v1601, 32
      %v1688 = vpop.permute.xlu0 %1687
      %1689 = vrot.lane.b32.xlu0 %v1602, 32
      %v1690 = vpop.permute.xlu0 %1689
      %1691 = vrot.lane.b32.xlu0 %v1603, 32
      %v1692 = vpop.permute.xlu0 %1691
      %1693 = vrot.lane.b32.xlu0 %v1604, 32
      %v1694 = vpop.permute.xlu0 %1693
      %vm1725 = vcmask 294144
      %1726 = vst.msk [vmem:[#allocation2] sm:$0xff] %vm1725, %v1636
      %vm1727 = vcmask 293120
      %1728 = vst.msk [vmem:[#allocation2 + $0x8] sm:$0x7f] %vm1727, %v1638
      %1729 = vst.msk [vmem:[#allocation2 + $0x10] sm:$0xff] %vm1725, %v1640
      %1730 = vst.msk [vmem:[#allocation2 + $0x18] sm:$0x7f] %vm1727, %v1642
      %1731 = vst.msk [vmem:[#allocation2 + $0x20] sm:$0xff] %vm1725, %v1644
      %1732 = vst.msk [vmem:[#allocation2 + $0x28] sm:$0x7f] %vm1727, %v1646
      %1733 = vst.msk [vmem:[#allocation2 + $0x30] sm:$0xff] %vm1725, %v1648
      %1734 = vst.msk [vmem:[#allocation2 + $0x38] sm:$0x7f] %vm1727, %v1650
      %1735 = vst.msk [vmem:[#allocation2 + $0x40] sm:$0xff] %vm1725, %v1652
      %1736 = vst.msk [vmem:[#allocation2 + $0x48] sm:$0x7f] %vm1727, %v1654
      %1737 = vst.msk [vmem:[#allocation2 + $0x50] sm:$0xff] %vm1725, %v1656
      %1738 = vst.msk [vmem:[#allocation2 + $0x58] sm:$0x7f] %vm1727, %v1658
      %1739 = vst.msk [vmem:[#allocation2 + $0x60] sm:$0xff] %vm1725, %v1660
      %1740 = vst.msk [vmem:[#allocation2 + $0x68] sm:$0x7f] %vm1727, %v1662
      %1741 = vst.msk [vmem:[#allocation2 + $0x70] sm:$0xff] %vm1725, %v1664
      %1742 = vst.msk [vmem:[#allocation2 + $0x78] sm:$0x7f] %vm1727, %v1666
      %1743 = vst.msk [vmem:[#allocation2 + $0x80] sm:$0xff] %vm1725, %v1668
      %1744 = vst.msk [vmem:[#allocation2 + $0x88] sm:$0x7f] %vm1727, %v1670
      %1745 = vst.msk [vmem:[#allocation2 + $0x90] sm:$0xff] %vm1725, %v1672
      %1746 = vst.msk [vmem:[#allocation2 + $0x98] sm:$0x7f] %vm1727, %v1674
      %1747 = vst.msk [vmem:[#allocation2 + $0xa0] sm:$0xff] %vm1725, %v1676
      %1748 = vst.msk [vmem:[#allocation2 + $0xa8] sm:$0x7f] %vm1727, %v1678
      %1749 = vst.msk [vmem:[#allocation2 + $0xb0] sm:$0xff] %vm1725, %v1680
      %1750 = vst.msk [vmem:[#allocation2 + $0xb8] sm:$0x7f] %vm1727, %v1682
      %1751 = vst.msk [vmem:[#allocation2 + $0xc0] sm:$0xff] %vm1725, %v1684
      %1752 = vst.msk [vmem:[#allocation2 + $0xc8] sm:$0x7f] %vm1727, %v1686
      %1753 = vst.msk [vmem:[#allocation2 + $0xd0] sm:$0xff] %vm1725, %v1688
      %1754 = vst.msk [vmem:[#allocation2 + $0xd8] sm:$0x7f] %vm1727, %v1690
      %1755 = vst.msk [vmem:[#allocation2 + $0xe0] sm:$0xff] %vm1725, %v1692
      %1756 = vst.msk [vmem:[#allocation2 + $0xe8] sm:$0x7f] %vm1727, %v1694
      %v1757 = vld [vmem:[#allocation2] sm:$0xff]
      %v1758 = vld [vmem:[#allocation2 + $0x8] sm:$0xff]
      %v1759 = vld [vmem:[#allocation2 + $0x10] sm:$0xff]
      %v1760 = vld [vmem:[#allocation2 + $0x18] sm:$0xff]
      %v1761 = vld [vmem:[#allocation2 + $0x20] sm:$0xff]
      %v1762 = vld [vmem:[#allocation2 + $0x28] sm:$0xff]
      %v1763 = vld [vmem:[#allocation2 + $0x30] sm:$0xff]
      %v1764 = vld [vmem:[#allocation2 + $0x38] sm:$0xff]
      %v1765 = vld [vmem:[#allocation2 + $0x40] sm:$0xff]
      %v1766 = vld [vmem:[#allocation2 + $0x48] sm:$0xff]
      %v1767 = vld [vmem:[#allocation2 + $0x50] sm:$0xff]
      %v1768 = vld [vmem:[#allocation2 + $0x58] sm:$0xff]
      %v1769 = vld [vmem:[#allocation2 + $0x60] sm:$0xff]
      %v1770 = vld [vmem:[#allocation2 + $0x68] sm:$0xff]
      %v1771 = vld [vmem:[#allocation2 + $0x70] sm:$0xff]
      %v1772 = vld [vmem:[#allocation2 + $0x78] sm:$0xff]
      %v1773 = vld [vmem:[#allocation2 + $0x80] sm:$0xff]
      %v1774 = vld [vmem:[#allocation2 + $0x88] sm:$0xff]
      %v1775 = vld [vmem:[#allocation2 + $0x90] sm:$0xff]
      %v1776 = vld [vmem:[#allocation2 + $0x98] sm:$0xff]
      %v1777 = vld [vmem:[#allocation2 + $0xa0] sm:$0xff]
      %v1778 = vld [vmem:[#allocation2 + $0xa8] sm:$0xff]
      %v1779 = vld [vmem:[#allocation2 + $0xb0] sm:$0xff]
      %v1780 = vld [vmem:[#allocation2 + $0xb8] sm:$0xff]
      %v1781 = vld [vmem:[#allocation2 + $0xc0] sm:$0xff]
      %v1782 = vld [vmem:[#allocation2 + $0xc8] sm:$0xff]
      %v1783 = vld [vmem:[#allocation2 + $0xd0] sm:$0xff]
      %v1784 = vld [vmem:[#allocation2 + $0xd8] sm:$0xff]
      %v1785 = vld [vmem:[#allocation2 + $0xe0] sm:$0xff]
      %v1786 = vld [vmem:[#allocation2 + $0xe8] sm:$0xff]
      %v1787 = vld [vmem:[#allocation2 + $0xf0] sm:$0xff]
      %v1788 = vld [vmem:[#allocation2 + $0xf8] sm:$0xff]
      %v1789 = vld [vmem:[%s1] sm:$0xff]
      %v1790 = vld [vmem:[%s1 + $0x8] sm:$0xf]
      %v1791 = vld [vmem:[%s2] sm:$0xff]
      %v1792 = vld [vmem:[%s2 + $0x8] sm:$0xf]
      %1794 = vset.pattern.permute.xlu0 0
      %1795 = vperm.xlu0 %1794, %v1791
      %v1796 = vpop.permute.xlu0 %1795
      %1799 = vset.pattern.permute.xlu0 0
      %1800 = vperm.xlu0 %1799, %v1792
      %v1801 = vpop.permute.xlu0 %1800
      %v1804 = vsel %vm171, %v1789, 0
      %v1807 = vsel %vm171, %v1790, 0
      %v1810 = vsel %vm171, %v1757, 0
      %v1813 = vsel %vm171, %v1758, 0
      %v1816 = vsel %vm171, %v1759, 0
      %v1819 = vsel %vm171, %v1760, 0
      %v1822 = vsel %vm171, %v1761, 0
      %v1825 = vsel %vm171, %v1762, 0
      %v1828 = vsel %vm171, %v1763, 0
      %v1831 = vsel %vm171, %v1764, 0
      %v1834 = vsel %vm171, %v1765, 0
      %v1837 = vsel %vm171, %v1766, 0
      %v1840 = vsel %vm171, %v1767, 0
      %v1843 = vsel %vm171, %v1768, 0
      %v1846 = vsel %vm171, %v1769, 0
      %v1849 = vsel %vm171, %v1770, 0
      %v1852 = vsel %vm171, %v1771, 0
      %v1855 = vsel %vm171, %v1772, 0
      %v1858 = vsel %vm171, %v1773, 0
      %v1861 = vsel %vm171, %v1774, 0
      %v1864 = vsel %vm171, %v1775, 0
      %v1867 = vsel %vm171, %v1776, 0
      %v1870 = vsel %vm171, %v1777, 0
      %v1873 = vsel %vm171, %v1778, 0
      %v1876 = vsel %vm171, %v1779, 0
      %v1879 = vsel %vm171, %v1780, 0
      %v1882 = vsel %vm171, %v1781, 0
      %v1885 = vsel %vm171, %v1782, 0
      %v1888 = vsel %vm171, %v1783, 0
      %v1891 = vsel %vm171, %v1784, 0
      %v1894 = vsel %vm171, %v1785, 0
      %v1897 = vsel %vm171, %v1786, 0
      %v1900 = vsel %vm171, %v1787, 0
      %v1903 = vsel %vm171, %v1788, 0
      %1905 = vmatpush.xpose.msra.mxu0 %v1855
      %1906 = vmatpush.xpose.msra.mxu0 %v1852
      %1907 = vmatpush.xpose.msra.mxu0 %v1849
      %1908 = vmatpush.xpose.msra.mxu0 %v1846
      %1909 = vmatpush.xpose.msra.mxu0 %v1843
      %1910 = vmatpush.xpose.msra.mxu0 %v1840
      %1911 = vmatpush.xpose.msra.mxu0 %v1837
      %1912 = vmatpush.xpose.msra.mxu0 %v1834
      %1913 = vmatpush.xpose.msra.mxu0 %v1831
      %1914 = vmatpush.xpose.msra.mxu0 %v1828
      %1915 = vmatpush.xpose.msra.mxu0 %v1825
      %1916 = vmatpush.xpose.msra.mxu0 %v1822
      %1917 = vmatpush.xpose.msra.mxu0 %v1819
      %1918 = vmatpush.xpose.msra.mxu0 %v1816
      %1919 = vmatpush.xpose.msra.mxu0 %v1813
      %1920 = vmatpush.xpose.msra.mxu0 %v1810
      %1921 = vmatmul.f32.gmra.mxu0 %v1804
      %v1922 = vpop.f32.mrf.mxu0
      %v1923 = vadd.f32 %v1796, %v1922
      %1924 = vmatmul.f32.gmra.mxu0 %v1807
      %v1925 = vpop.f32.mrf.mxu0
      %v1926 = vadd.f32 %v1801, %v1925
      %1927 = vdwg.mxu0
      %1928 = vmatpush.xpose.msra.mxu0 %v1903
      %1929 = vmatpush.xpose.msra.mxu0 %v1900
      %1930 = vmatpush.xpose.msra.mxu0 %v1897
      %1931 = vmatpush.xpose.msra.mxu0 %v1894
      %1932 = vmatpush.xpose.msra.mxu0 %v1891
      %1933 = vmatpush.xpose.msra.mxu0 %v1888
      %1934 = vmatpush.xpose.msra.mxu0 %v1885
      %1935 = vmatpush.xpose.msra.mxu0 %v1882
      %1936 = vmatpush.xpose.msra.mxu0 %v1879
      %1937 = vmatpush.xpose.msra.mxu0 %v1876
      %1938 = vmatpush.xpose.msra.mxu0 %v1873
      %1939 = vmatpush.xpose.msra.mxu0 %v1870
      %1940 = vmatpush.xpose.msra.mxu0 %v1867
      %1941 = vmatpush.xpose.msra.mxu0 %v1864
      %1942 = vmatpush.xpose.msra.mxu0 %v1861
      %1943 = vmatpush.xpose.msra.mxu0 %v1858
      %1944 = vmatmul.f32.gmra.mxu0 %v1804
      %v1945 = vpop.f32.mrf.mxu0
      %v1946 = vadd.f32 %v1796, %v1945
      %1947 = vmatmul.f32.gmra.mxu0 %v1807
      %v1948 = vpop.f32.mrf.mxu0
      %v1949 = vadd.f32 %v1801, %v1948
      %1950 = vdwg.mxu0
      %1951 = vst [vmem:[%s170] sm:$0xff] %v1923
      %1952 = vst [vmem:[%s170 + $0x8] sm:$0xff] %v1946
      %1953 = vst [vmem:[%s170 + $0x10] sm:$0xf] %v1926
      %1954 = vst [vmem:[%s170 + $0x18] sm:$0xf] %v1949
      %p1955 = scmp.lt.s32.totalorder %s14, 1
      %s1956 = scalar_select %p1955, %s14, 1
      %s1957 = smul.addr %s1956, 4
      %s1958 = smul.addr %s1957, 8
      %s1959 = scalar_lea.vmem %s3, %s1958
      // Predicated region
      $region33: #{pixel_shuffle_block.1} parent=31 // pred_check
        %p1960 = pneg %p100
      $region34: #{pixel_shuffle_block.1} parent=31 // pred_check_branch
        %1962 = sbr.rel (%p1960) target = $region36
      $region35: #{pixel_shuffle_block.1} parent=31 // pred_region
        _
      $region36: #{pixel_shuffle_block.1} parent=31 // pred_fallthru
        _
    $region32: #{pixel_shuffle_block.1} parent=5 // pred_fallthru
      _
    %p1963 = scmp.le.s32.totalorder 2, %s9
    // Predicated region
    $region37: #{pixel_shuffle_block.1} parent=5 // pred_check
      %p1964 = pneg %p1963
    $region38: #{pixel_shuffle_block.1} parent=5 // pred_check_branch
      %1966 = sbr.rel (%p1964) target = $region40
    $region39: #{pixel_shuffle_block.1} parent=5 // pred_region
      %s1967 = ssub.s32 %s9, 2
      // Predicated region
      $region41: #{pixel_shuffle_block.1} parent=39 // pred_check
        %p1968 = pneg %p106
      $region42: #{pixel_shuffle_block.1} parent=39 // pred_check_branch
        %1970 = sbr.rel (%p1968) target = $region44
      $region43: #{pixel_shuffle_block.1} parent=39 // pred_region
        %p1971 = scmp.lt.s32.totalorder %s15, 1
        %s1972 = scalar_select %p1971, %s15, 1
        %s1973 = smul.addr %s1972, 4
        %s1974 = smul.addr %s1973, 8
        %s1975 = scalar_lea.vmem %s3, %s1974
      $region44: #{pixel_shuffle_block.1} parent=39 // pred_fallthru
        _
    $region40: #{pixel_shuffle_block.1} parent=5 // pred_fallthru
      _
  $region6: #{pixel_shuffle_block.1} parent=0 // loop_footer
    %s13 = sadd.s32 1, %s9
  $region7: #{pixel_shuffle_block.1} parent=0 // loop_footer_branch
    %8 = sbr.rel target = $region3
  $region8: #{pixel_shuffle_block.1} parent=0 // loop_exit
    _

</llo_original>
